<compile_context>
chip_gen: v7x
topology: tpu7x:2x2x1
jax: 0.10.0
libtpu: 0.0.40
codegen_flags: <defaults>
</compile_context>

<pallas_src>
import jax
import jax.numpy as jnp
from jax.experimental import pallas as pl
from jax.experimental.pallas import tpu as pltpu


def dec_embed_kernel(x_ref,
                     wc1_ref, bc1_ref, wc2_ref, bc2_ref, wc34_ref, bc34_ref,
                     w1_ref, b1_ref, w2_ref, b2_ref,
                     ws1o_ref, ws1d_ref, bs1_ref, ws2_ref, bs2_ref,
                     out_ref):
    BB, N, _, CIN = x_ref.shape
    C = out_ref.shape[-1]
    f32 = jnp.float32

    # ---- time_conv: 1x1 convs as channel matmuls over all B*N*N pixels ----
    xs = x_ref[...].reshape(BB * N * N, CIN)                 # cheap leading-dim merge
    h = jnp.dot(xs, wc1_ref[...], preferred_element_type=f32) + bc1_ref[...]
    h = jnp.maximum(h, 0.0)
    h = jnp.dot(h, wc2_ref[...], preferred_element_type=f32) + bc2_ref[...]
    h = jnp.maximum(h, 0.0)                                  # (BB*N*N, 32)

    # conv3+conv4 folded (no activation between them): multiply by a (1, 32)
    # row vector and reduce over lanes.  Result is already in
    # (rows=(b,i), lanes=j) layout, avoiding a (rows, 1) -> (BB, N, N) relayout.
    h = h.reshape(BB * N, N, h.shape[-1])                    # cheap leading-dim split
    t2 = jnp.sum(h * wc34_ref[...], axis=-1) + bc34_ref[...] # (BB*N, N) == t rows

    # ---- node MLP (shared weights) on rows (x_o) and on columns (x_d) ----
    if BB == 1:
        t2_t = t2.T                                          # 2-D minor transpose
    else:
        t2_t = jnp.swapaxes(t2.reshape(BB, N, N), 1, 2).reshape(BB * N, N)

    def node_mlp(z):
        zh = jnp.dot(z, w1_ref[...], preferred_element_type=f32) + b1_ref[...]
        zh = jnp.maximum(zh, 0.0)
        return jnp.dot(zh, w2_ref[...], preferred_element_type=f32) + b2_ref[...]

    x_o = node_mlp(t2)                                       # (BB*N, C)
    x_d = node_mlp(t2_t)                                     # (BB*N, C)

    # ---- star MLP: fc1 over concat([x_o, x_d], -1) done as a split matmul ----
    hs = (jnp.dot(x_o, ws1o_ref[...], preferred_element_type=f32)
          + jnp.dot(x_d, ws1d_ref[...], preferred_element_type=f32)
          + bs1_ref[...])
    hs = jnp.maximum(hs, 0.0)
    o = jnp.dot(hs, ws2_ref[...], preferred_element_type=f32) + bs2_ref[...]  # (BB*N, C)

    out_ref[...] = o.reshape(BB, N, C).astype(out_ref.dtype)


def dec_embed_forward(x, params, *, batch_block=None):
    """x: (B, 6, N, N) float32, PyTorch NCHW layout.

    params = (wc1,bc1, wc2,bc2, wc3,bc3, wc4,bc4, w1,b1, w2,b2, ws1,bs1, ws2,bs2)
    with every weight stored as (in, out) (== torch weight.T) and biases (1, out)
    (bc4 is (1, 1))."""
    (wc1, bc1, wc2, bc2, wc3, bc3, wc4, bc4,
     w1, b1, w2, b2, ws1, bs1, ws2, bs2) = params
    B, CIN, N, N2 = x.shape
    assert N == N2, "Dec_Embed requires a square (num_node x num_node) map"
    C = w2.shape[1]

    # Whole batch in one grid step (the kernel is overhead-bound at these
    # sizes).  On v7x, batch_block = B // 2 gives a 2-step parallel grid that
    # shards across the two TensorCores.
    BB = B if batch_block is None else batch_block
    assert B % BB == 0

    # Layout plumbing outside the kernel.
    x_nlc = jnp.transpose(x, (0, 2, 3, 1))              # (B, N, N, 6) channels-last
    # Fold conv3 (32->16) and conv4 (16->1): no nonlinearity between them.
    wc34 = jnp.reshape(wc3 @ wc4, (1, wc3.shape[0]))    # (1, 32) row vector
    bc34 = bc3 @ wc4 + bc4                              # (1, 1) scalar bias
    ws1_o, ws1_d = ws1[:C], ws1[C:]                     # split star-fc1 weight

    weights = (wc1, bc1, wc2, bc2, wc34, bc34,
               w1, b1, w2, b2, ws1_o, ws1_d, bs1, ws2, bs2)

    def full_spec(arr):
        n = arr.ndim
        return pl.BlockSpec(arr.shape, lambda g, _n=n: (0,) * _n)

    return pl.pallas_call(
        dec_embed_kernel,
        out_shape=jax.ShapeDtypeStruct((B, N, C), x.dtype),
        grid_spec=pltpu.PrefetchScalarGridSpec(
            num_scalar_prefetch=0,
            grid=(B // BB,),
            in_specs=[pl.BlockSpec((BB, N, N, CIN), lambda g: (g, 0, 0, 0))]
                     + [full_spec(w) for w in weights],
            out_specs=pl.BlockSpec((BB, N, C), lambda g: (g, 0, 0)),
        ),
        compiler_params=pltpu.CompilerParams(
            dimension_semantics=("parallel",)),
    )(x_nlc, *weights)


def dec_embed_reference(x, params):
    """Pure-JAX reference, faithful to the PyTorch forward (unfused convs)."""
    (wc1, bc1, wc2, bc2, wc3, bc3, wc4, bc4,
     w1, b1, w2, b2, ws1, bs1, ws2, bs2) = params
    h = jnp.transpose(x, (0, 2, 3, 1))                  # 1x1 convs == channel matmuls
    h = jnp.maximum(h @ wc1 + bc1, 0.0)
    h = jnp.maximum(h @ wc2 + bc2, 0.0)
    h = h @ wc3 + bc3
    t = (h @ wc4 + bc4)[..., 0]                         # time_conv(x).squeeze(1): (B, N, N)

    def mlp(z, wa, ba, wb, bb):                         # Dropout(p=0.0) is identity
        return jnp.maximum(z @ wa + ba, 0.0) @ wb + bb

    x_o = mlp(t, w1, b1, w2, b2)
    x_d = mlp(jnp.transpose(t, (0, 2, 1)), w1, b1, w2, b2)
    star = jnp.concatenate([x_o, x_d], axis=2)
    return mlp(star, ws1, bs1, ws2, bs2)


if __name__ == "__main__":
    B, N, C, CIN = 2, 16, 32, 6       # batch, num_node, embed_dim, conv input channels

    key = jax.random.PRNGKey(0)
    ks = jax.random.split(key, 18)

    x = jax.random.normal(ks[0], (B, CIN, N, N), jnp.float32)

    def linear(kw, kb, fin, fout):
        s = 1.0 / jnp.sqrt(jnp.float32(fin))
        w = jax.random.uniform(kw, (fin, fout), jnp.float32, -s, s)   # (in, out) == torch W.T
        b = jax.random.uniform(kb, (1, fout), jnp.float32, -s, s)
        return w, b

    wc1, bc1 = linear(ks[1], ks[2], CIN, 64)
    wc2, bc2 = linear(ks[3], ks[4], 64, 32)
    wc3, bc3 = linear(ks[5], ks[6], 32, 16)
    wc4, bc4 = linear(ks[7], ks[8], 16, 1)
    w1, b1 = linear(ks[9], ks[10], N, C)          # mlp: num_node -> embed_dim
    w2, b2 = linear(ks[11], ks[12], C, C)
    ws1, bs1 = linear(ks[13], ks[14], 2 * C, C)   # star_mlp: 2*embed_dim -> embed_dim
    ws2, bs2 = linear(ks[15], ks[16], C, C)
    params = (wc1, bc1, wc2, bc2, wc3, bc3, wc4, bc4,
              w1, b1, w2, b2, ws1, bs1, ws2, bs2)

    out = dec_embed_forward(x, params)
    out = jax.block_until_ready(out)

    ref = dec_embed_reference(x, params)
    assert out.shape == (B, N, C)
    err = float(jnp.max(jnp.abs(out - ref)))
    assert jnp.allclose(out, ref, atol=1e-4, rtol=1e-4), (
        f"kernel mismatch vs reference: max abs err {err}")

    print("KERNEL_OK")
</pallas_src>

<mosaic_0001>
module attributes {stable_mosaic.version = 11 : i64} {
  func.func @dec_embed_kernel(%arg0: i32, %arg1: memref<2x16x16x6xf32, #tpu.memory_space<vmem>>, %arg2: memref<6x64xf32, #tpu.memory_space<vmem>>, %arg3: memref<1x64xf32, #tpu.memory_space<vmem>>, %arg4: memref<64x32xf32, #tpu.memory_space<vmem>>, %arg5: memref<1x32xf32, #tpu.memory_space<vmem>>, %arg6: memref<1x32xf32, #tpu.memory_space<vmem>>, %arg7: memref<1x1xf32, #tpu.memory_space<vmem>>, %arg8: memref<16x32xf32, #tpu.memory_space<vmem>>, %arg9: memref<1x32xf32, #tpu.memory_space<vmem>>, %arg10: memref<32x32xf32, #tpu.memory_space<vmem>>, %arg11: memref<1x32xf32, #tpu.memory_space<vmem>>, %arg12: memref<32x32xf32, #tpu.memory_space<vmem>>, %arg13: memref<32x32xf32, #tpu.memory_space<vmem>>, %arg14: memref<1x32xf32, #tpu.memory_space<vmem>>, %arg15: memref<32x32xf32, #tpu.memory_space<vmem>>, %arg16: memref<1x32xf32, #tpu.memory_space<vmem>>, %arg17: memref<2x16x32xf32, #tpu.memory_space<vmem>>) attributes {dimension_semantics = [#tpu.dimension_semantics<parallel>], iteration_bounds = array<i64: 1>, scalar_prefetch = 0 : i64, scratch_operands = 0 : i64, tpu.core_type = #tpu.core_type<tc>, window_params = [{transform_indices = @transform_0, window_bounds = array<i64: 2, 16, 16, 6>}, {pipeline_mode = #tpu.pipeline_mode<synchronous>, transform_indices = @transform_1, window_bounds = array<i64: 6, 64>}, {pipeline_mode = #tpu.pipeline_mode<synchronous>, transform_indices = @transform_2, window_bounds = array<i64: 1, 64>}, {pipeline_mode = #tpu.pipeline_mode<synchronous>, transform_indices = @transform_3, window_bounds = array<i64: 64, 32>}, {pipeline_mode = #tpu.pipeline_mode<synchronous>, transform_indices = @transform_4, window_bounds = array<i64: 1, 32>}, {pipeline_mode = #tpu.pipeline_mode<synchronous>, transform_indices = @transform_5, window_bounds = array<i64: 1, 32>}, {pipeline_mode = #tpu.pipeline_mode<synchronous>, transform_indices = @transform_6, window_bounds = array<i64: 1, 1>}, {pipeline_mode = #tpu.pipeline_mode<synchronous>, transform_indices = @transform_7, window_bounds = array<i64: 16, 32>}, {pipeline_mode = #tpu.pipeline_mode<synchronous>, transform_indices = @transform_8, window_bounds = array<i64: 1, 32>}, {pipeline_mode = #tpu.pipeline_mode<synchronous>, transform_indices = @transform_9, window_bounds = array<i64: 32, 32>}, {pipeline_mode = #tpu.pipeline_mode<synchronous>, transform_indices = @transform_10, window_bounds = array<i64: 1, 32>}, {pipeline_mode = #tpu.pipeline_mode<synchronous>, transform_indices = @transform_11, window_bounds = array<i64: 32, 32>}, {pipeline_mode = #tpu.pipeline_mode<synchronous>, transform_indices = @transform_12, window_bounds = array<i64: 32, 32>}, {pipeline_mode = #tpu.pipeline_mode<synchronous>, transform_indices = @transform_13, window_bounds = array<i64: 1, 32>}, {pipeline_mode = #tpu.pipeline_mode<synchronous>, transform_indices = @transform_14, window_bounds = array<i64: 32, 32>}, {pipeline_mode = #tpu.pipeline_mode<synchronous>, transform_indices = @transform_15, window_bounds = array<i64: 1, 32>}, {transform_indices = @transform_16, window_bounds = array<i64: 2, 16, 32>}]} {
    %c0 = arith.constant 0 : index
    %c0_0 = arith.constant 0 : index
    %c0_1 = arith.constant 0 : index
    %c0_2 = arith.constant 0 : index
    %0 = vector.load %arg1[%c0, %c0_0, %c0_1, %c0_2] : memref<2x16x16x6xf32, #tpu.memory_space<vmem>>, vector<2x16x16x6xf32>
    %1 = vector.shape_cast %0 : vector<2x16x16x6xf32> to vector<512x6xf32>
    %c0_3 = arith.constant 0 : index
    %c0_4 = arith.constant 0 : index
    %2 = vector.load %arg2[%c0_3, %c0_4] : memref<6x64xf32, #tpu.memory_space<vmem>>, vector<6x64xf32>
    %cst = arith.constant dense<0.000000e+00> : vector<512x64xf32>
    %3 = tpu.matmul %1, %2, %cst {dimension_numbers = #tpu.dot_dimension_numbers<[1], [0], [0], [1], [0, 0, 1, 1], [], []>} : vector<512x6xf32>, vector<6x64xf32>, vector<512x64xf32> -> vector<512x64xf32>
    %c0_5 = arith.constant 0 : index
    %c0_6 = arith.constant 0 : index
    %4 = vector.load %arg3[%c0_5, %c0_6] : memref<1x64xf32, #tpu.memory_space<vmem>>, vector<1x64xf32>
    %5 = vector.broadcast %4 : vector<1x64xf32> to vector<512x64xf32>
    %6 = arith.addf %3, %5 : vector<512x64xf32>
    %cst_7 = arith.constant 0.000000e+00 : f32
    %7 = vector.broadcast %cst_7 : f32 to vector<512x64xf32>
    %8 = arith.maximumf %6, %7 : vector<512x64xf32>
    %c0_8 = arith.constant 0 : index
    %c0_9 = arith.constant 0 : index
    %9 = vector.load %arg4[%c0_8, %c0_9] : memref<64x32xf32, #tpu.memory_space<vmem>>, vector<64x32xf32>
    %cst_10 = arith.constant dense<0.000000e+00> : vector<512x32xf32>
    %10 = tpu.matmul %8, %9, %cst_10 {dimension_numbers = #tpu.dot_dimension_numbers<[1], [0], [0], [1], [0, 0, 1, 1], [], []>} : vector<512x64xf32>, vector<64x32xf32>, vector<512x32xf32> -> vector<512x32xf32>
    %c0_11 = arith.constant 0 : index
    %c0_12 = arith.constant 0 : index
    %11 = vector.load %arg5[%c0_11, %c0_12] : memref<1x32xf32, #tpu.memory_space<vmem>>, vector<1x32xf32>
    %12 = vector.broadcast %11 : vector<1x32xf32> to vector<512x32xf32>
    %13 = arith.addf %10, %12 : vector<512x32xf32>
    %cst_13 = arith.constant 0.000000e+00 : f32
    %14 = vector.broadcast %cst_13 : f32 to vector<512x32xf32>
    %15 = arith.maximumf %13, %14 : vector<512x32xf32>
    %16 = vector.shape_cast %15 : vector<512x32xf32> to vector<32x16x32xf32>
    %c0_14 = arith.constant 0 : index
    %c0_15 = arith.constant 0 : index
    %17 = vector.load %arg6[%c0_14, %c0_15] : memref<1x32xf32, #tpu.memory_space<vmem>>, vector<1x32xf32>
    %18 = vector.shape_cast %17 : vector<1x32xf32> to vector<1x1x32xf32>
    %19 = vector.broadcast %18 : vector<1x1x32xf32> to vector<32x16x32xf32>
    %20 = arith.mulf %16, %19 : vector<32x16x32xf32>
    %cst_16 = arith.constant dense<0.000000e+00> : vector<32x16xf32>
    %21 = vector.multi_reduction <add>, %20, %cst_16 [2] : vector<32x16x32xf32> to vector<32x16xf32>
    %c0_17 = arith.constant 0 : index
    %c0_18 = arith.constant 0 : index
    %22 = vector.load %arg7[%c0_17, %c0_18] : memref<1x1xf32, #tpu.memory_space<vmem>>, vector<1x1xf32>
    %23 = vector.broadcast %22 : vector<1x1xf32> to vector<32x16xf32>
    %24 = arith.addf %21, %23 : vector<32x16xf32>
    %25 = vector.shape_cast %24 : vector<32x16xf32> to vector<2x16x16xf32>
    %26 = tpu.transpose %25, [0, 2, 1] : vector<2x16x16xf32> -> vector<2x16x16xf32>
    %27 = vector.shape_cast %26 : vector<2x16x16xf32> to vector<32x16xf32>
    %c0_19 = arith.constant 0 : index
    %c0_20 = arith.constant 0 : index
    %28 = vector.load %arg8[%c0_19, %c0_20] : memref<16x32xf32, #tpu.memory_space<vmem>>, vector<16x32xf32>
    %cst_21 = arith.constant dense<0.000000e+00> : vector<32x32xf32>
    %29 = tpu.matmul %24, %28, %cst_21 {dimension_numbers = #tpu.dot_dimension_numbers<[1], [0], [0], [1], [0, 0, 1, 1], [], []>} : vector<32x16xf32>, vector<16x32xf32>, vector<32x32xf32> -> vector<32x32xf32>
    %c0_22 = arith.constant 0 : index
    %c0_23 = arith.constant 0 : index
    %30 = vector.load %arg9[%c0_22, %c0_23] : memref<1x32xf32, #tpu.memory_space<vmem>>, vector<1x32xf32>
    %31 = vector.broadcast %30 : vector<1x32xf32> to vector<32x32xf32>
    %32 = arith.addf %29, %31 : vector<32x32xf32>
    %cst_24 = arith.constant 0.000000e+00 : f32
    %33 = vector.broadcast %cst_24 : f32 to vector<32x32xf32>
    %34 = arith.maximumf %32, %33 : vector<32x32xf32>
    %c0_25 = arith.constant 0 : index
    %c0_26 = arith.constant 0 : index
    %35 = vector.load %arg10[%c0_25, %c0_26] : memref<32x32xf32, #tpu.memory_space<vmem>>, vector<32x32xf32>
    %cst_27 = arith.constant dense<0.000000e+00> : vector<32x32xf32>
    %36 = tpu.matmul %34, %35, %cst_27 {dimension_numbers = #tpu.dot_dimension_numbers<[1], [0], [0], [1], [0, 0, 1, 1], [], []>} : vector<32x32xf32>, vector<32x32xf32>, vector<32x32xf32> -> vector<32x32xf32>
    %c0_28 = arith.constant 0 : index
    %c0_29 = arith.constant 0 : index
    %37 = vector.load %arg11[%c0_28, %c0_29] : memref<1x32xf32, #tpu.memory_space<vmem>>, vector<1x32xf32>
    %38 = vector.broadcast %37 : vector<1x32xf32> to vector<32x32xf32>
    %39 = arith.addf %36, %38 : vector<32x32xf32>
    %c0_30 = arith.constant 0 : index
    %c0_31 = arith.constant 0 : index
    %40 = vector.load %arg8[%c0_30, %c0_31] : memref<16x32xf32, #tpu.memory_space<vmem>>, vector<16x32xf32>
    %cst_32 = arith.constant dense<0.000000e+00> : vector<32x32xf32>
    %41 = tpu.matmul %27, %40, %cst_32 {dimension_numbers = #tpu.dot_dimension_numbers<[1], [0], [0], [1], [0, 0, 1, 1], [], []>} : vector<32x16xf32>, vector<16x32xf32>, vector<32x32xf32> -> vector<32x32xf32>
    %c0_33 = arith.constant 0 : index
    %c0_34 = arith.constant 0 : index
    %42 = vector.load %arg9[%c0_33, %c0_34] : memref<1x32xf32, #tpu.memory_space<vmem>>, vector<1x32xf32>
    %43 = vector.broadcast %42 : vector<1x32xf32> to vector<32x32xf32>
    %44 = arith.addf %41, %43 : vector<32x32xf32>
    %cst_35 = arith.constant 0.000000e+00 : f32
    %45 = vector.broadcast %cst_35 : f32 to vector<32x32xf32>
    %46 = arith.maximumf %44, %45 : vector<32x32xf32>
    %c0_36 = arith.constant 0 : index
    %c0_37 = arith.constant 0 : index
    %47 = vector.load %arg10[%c0_36, %c0_37] : memref<32x32xf32, #tpu.memory_space<vmem>>, vector<32x32xf32>
    %cst_38 = arith.constant dense<0.000000e+00> : vector<32x32xf32>
    %48 = tpu.matmul %46, %47, %cst_38 {dimension_numbers = #tpu.dot_dimension_numbers<[1], [0], [0], [1], [0, 0, 1, 1], [], []>} : vector<32x32xf32>, vector<32x32xf32>, vector<32x32xf32> -> vector<32x32xf32>
    %c0_39 = arith.constant 0 : index
    %c0_40 = arith.constant 0 : index
    %49 = vector.load %arg11[%c0_39, %c0_40] : memref<1x32xf32, #tpu.memory_space<vmem>>, vector<1x32xf32>
    %50 = vector.broadcast %49 : vector<1x32xf32> to vector<32x32xf32>
    %51 = arith.addf %48, %50 : vector<32x32xf32>
    %c0_41 = arith.constant 0 : index
    %c0_42 = arith.constant 0 : index
    %52 = vector.load %arg12[%c0_41, %c0_42] : memref<32x32xf32, #tpu.memory_space<vmem>>, vector<32x32xf32>
    %cst_43 = arith.constant dense<0.000000e+00> : vector<32x32xf32>
    %53 = tpu.matmul %39, %52, %cst_43 {dimension_numbers = #tpu.dot_dimension_numbers<[1], [0], [0], [1], [0, 0, 1, 1], [], []>} : vector<32x32xf32>, vector<32x32xf32>, vector<32x32xf32> -> vector<32x32xf32>
    %c0_44 = arith.constant 0 : index
    %c0_45 = arith.constant 0 : index
    %54 = vector.load %arg13[%c0_44, %c0_45] : memref<32x32xf32, #tpu.memory_space<vmem>>, vector<32x32xf32>
    %cst_46 = arith.constant dense<0.000000e+00> : vector<32x32xf32>
    %55 = tpu.matmul %51, %54, %cst_46 {dimension_numbers = #tpu.dot_dimension_numbers<[1], [0], [0], [1], [0, 0, 1, 1], [], []>} : vector<32x32xf32>, vector<32x32xf32>, vector<32x32xf32> -> vector<32x32xf32>
    %56 = arith.addf %53, %55 : vector<32x32xf32>
    %c0_47 = arith.constant 0 : index
    %c0_48 = arith.constant 0 : index
    %57 = vector.load %arg14[%c0_47, %c0_48] : memref<1x32xf32, #tpu.memory_space<vmem>>, vector<1x32xf32>
    %58 = vector.broadcast %57 : vector<1x32xf32> to vector<32x32xf32>
    %59 = arith.addf %56, %58 : vector<32x32xf32>
    %cst_49 = arith.constant 0.000000e+00 : f32
    %60 = vector.broadcast %cst_49 : f32 to vector<32x32xf32>
    %61 = arith.maximumf %59, %60 : vector<32x32xf32>
    %c0_50 = arith.constant 0 : index
    %c0_51 = arith.constant 0 : index
    %62 = vector.load %arg15[%c0_50, %c0_51] : memref<32x32xf32, #tpu.memory_space<vmem>>, vector<32x32xf32>
    %cst_52 = arith.constant dense<0.000000e+00> : vector<32x32xf32>
    %63 = tpu.matmul %61, %62, %cst_52 {dimension_numbers = #tpu.dot_dimension_numbers<[1], [0], [0], [1], [0, 0, 1, 1], [], []>} : vector<32x32xf32>, vector<32x32xf32>, vector<32x32xf32> -> vector<32x32xf32>
    %c0_53 = arith.constant 0 : index
    %c0_54 = arith.constant 0 : index
    %64 = vector.load %arg16[%c0_53, %c0_54] : memref<1x32xf32, #tpu.memory_space<vmem>>, vector<1x32xf32>
    %65 = vector.broadcast %64 : vector<1x32xf32> to vector<32x32xf32>
    %66 = arith.addf %63, %65 : vector<32x32xf32>
    %67 = vector.shape_cast %66 : vector<32x32xf32> to vector<2x16x32xf32>
    %c0_55 = arith.constant 0 : index
    %c0_56 = arith.constant 0 : index
    %c0_57 = arith.constant 0 : index
    %68 = vector.load %arg17[%c0_55, %c0_56, %c0_57] : memref<2x16x32xf32, #tpu.memory_space<vmem>>, vector<2x16x32xf32>
    tpu.vector_store %arg17[%c0_55, %c0_56, %c0_57], %67 {strides = array<i32>} : memref<2x16x32xf32, #tpu.memory_space<vmem>>, vector<2x16x32xf32>,
    return
  }
  func.func @transform_0(%arg0: i32) -> (i32, i32, i32, i32) {
    %c0_i32 = arith.constant 0 : i32
    %c0_i32_0 = arith.constant 0 : i32
    %c0_i32_1 = arith.constant 0 : i32
    %c0_i32_2 = arith.constant 0 : i32
    return %arg0, %c0_i32, %c0_i32_0, %c0_i32_1 : i32, i32, i32, i32
  }
  func.func @transform_1(%arg0: i32) -> (i32, i32) {
    %c0_i32 = arith.constant 0 : i32
    %c0_i32_0 = arith.constant 0 : i32
    %c0_i32_1 = arith.constant 0 : i32
    return %c0_i32, %c0_i32_0 : i32, i32
  }
  func.func @transform_2(%arg0: i32) -> (i32, i32) {
    %c0_i32 = arith.constant 0 : i32
    %c0_i32_0 = arith.constant 0 : i32
    %c0_i32_1 = arith.constant 0 : i32
    return %c0_i32, %c0_i32_0 : i32, i32
  }
  func.func @transform_3(%arg0: i32) -> (i32, i32) {
    %c0_i32 = arith.constant 0 : i32
    %c0_i32_0 = arith.constant 0 : i32
    %c0_i32_1 = arith.constant 0 : i32
    return %c0_i32, %c0_i32_0 : i32, i32
  }
  func.func @transform_4(%arg0: i32) -> (i32, i32) {
    %c0_i32 = arith.constant 0 : i32
    %c0_i32_0 = arith.constant 0 : i32
    %c0_i32_1 = arith.constant 0 : i32
    return %c0_i32, %c0_i32_0 : i32, i32
  }
  func.func @transform_5(%arg0: i32) -> (i32, i32) {
    %c0_i32 = arith.constant 0 : i32
    %c0_i32_0 = arith.constant 0 : i32
    %c0_i32_1 = arith.constant 0 : i32
    return %c0_i32, %c0_i32_0 : i32, i32
  }
  func.func @transform_6(%arg0: i32) -> (i32, i32) {
    %c0_i32 = arith.constant 0 : i32
    %c0_i32_0 = arith.constant 0 : i32
    %c0_i32_1 = arith.constant 0 : i32
    return %c0_i32, %c0_i32_0 : i32, i32
  }
  func.func @transform_7(%arg0: i32) -> (i32, i32) {
    %c0_i32 = arith.constant 0 : i32
    %c0_i32_0 = arith.constant 0 : i32
    %c0_i32_1 = arith.constant 0 : i32
    return %c0_i32, %c0_i32_0 : i32, i32
  }
  func.func @transform_8(%arg0: i32) -> (i32, i32) {
    %c0_i32 = arith.constant 0 : i32
    %c0_i32_0 = arith.constant 0 : i32
    %c0_i32_1 = arith.constant 0 : i32
    return %c0_i32, %c0_i32_0 : i32, i32
  }
  func.func @transform_9(%arg0: i32) -> (i32, i32) {
    %c0_i32 = arith.constant 0 : i32
    %c0_i32_0 = arith.constant 0 : i32
    %c0_i32_1 = arith.constant 0 : i32
    return %c0_i32, %c0_i32_0 : i32, i32
  }
  func.func @transform_10(%arg0: i32) -> (i32, i32) {
    %c0_i32 = arith.constant 0 : i32
    %c0_i32_0 = arith.constant 0 : i32
    %c0_i32_1 = arith.constant 0 : i32
    return %c0_i32, %c0_i32_0 : i32, i32
  }
  func.func @transform_11(%arg0: i32) -> (i32, i32) {
    %c0_i32 = arith.constant 0 : i32
    %c0_i32_0 = arith.constant 0 : i32
    %c0_i32_1 = arith.constant 0 : i32
    return %c0_i32, %c0_i32_0 : i32, i32
  }
  func.func @transform_12(%arg0: i32) -> (i32, i32) {
    %c0_i32 = arith.constant 0 : i32
    %c0_i32_0 = arith.constant 0 : i32
    %c0_i32_1 = arith.constant 0 : i32
    return %c0_i32, %c0_i32_0 : i32, i32
  }
  func.func @transform_13(%arg0: i32) -> (i32, i32) {
    %c0_i32 = arith.constant 0 : i32
    %c0_i32_0 = arith.constant 0 : i32
    %c0_i32_1 = arith.constant 0 : i32
    return %c0_i32, %c0_i32_0 : i32, i32
  }
  func.func @transform_14(%arg0: i32) -> (i32, i32) {
    %c0_i32 = arith.constant 0 : i32
    %c0_i32_0 = arith.constant 0 : i32
    %c0_i32_1 = arith.constant 0 : i32
    return %c0_i32, %c0_i32_0 : i32, i32
  }
  func.func @transform_15(%arg0: i32) -> (i32, i32) {
    %c0_i32 = arith.constant 0 : i32
    %c0_i32_0 = arith.constant 0 : i32
    %c0_i32_1 = arith.constant 0 : i32
    return %c0_i32, %c0_i32_0 : i32, i32
  }
  func.func @transform_16(%arg0: i32) -> (i32, i32, i32) {
    %c0_i32 = arith.constant 0 : i32
    %c0_i32_0 = arith.constant 0 : i32
    %c0_i32_1 = arith.constant 0 : i32
    return %arg0, %c0_i32, %c0_i32_0 : i32, i32, i32
  }
}

</mosaic_0001>

<llo_original>
// kernel: tpu_custom_call.1
$region0: #{tpu_custom_call.1}
  #allocation0 [shape = 'u32[]', space=smem, size = 0x4, offset = 0x4, fixed_abs, tag = 'smem constant byte address 0x4 - core index']
  #allocation1 [shape = 'u32[144,128]{1,0:T(1,128)}', space=vmem, size = 0x12000, scoped, tag = 'internal scratch']
  #allocation2 [shape = 'f32[1,1]{1,0:T(1,128)S(1)}', space=vmem, size = 0x200, scoped, tag = 'scoped memory for tpu_custom_call.1']
  %s0 = inlined_call_operand.vmem [shape: f32[2,16,16,6], index: 0, kind: input, shape index: {}]
  %s1 = inlined_call_operand.vmem [shape: f32[6,64], index: 1, kind: input, shape index: {}]
  %s2 = inlined_call_operand.vmem [shape: f32[1,64], index: 2, kind: input, shape index: {}]
  %s3 = inlined_call_operand.vmem [shape: f32[64,32], index: 3, kind: input, shape index: {}]
  %s4 = inlined_call_operand.vmem [shape: f32[1,32], index: 4, kind: input, shape index: {}]
  %s5 = inlined_call_operand.vmem [shape: f32[1,32], index: 5, kind: input, shape index: {}]
  %s6 = inlined_call_operand.<no memory space> [shape: f32[1,1], index: 6, kind: input, shape index: {}]
  %s7 = inlined_call_operand.vmem [shape: f32[16,32], index: 7, kind: input, shape index: {}]
  %s8 = inlined_call_operand.vmem [shape: f32[1,32], index: 8, kind: input, shape index: {}]
  %s9 = inlined_call_operand.vmem [shape: f32[32,32], index: 9, kind: input, shape index: {}]
  %s10 = inlined_call_operand.vmem [shape: f32[1,32], index: 10, kind: input, shape index: {}]
  %s11 = inlined_call_operand.vmem [shape: f32[32,32], index: 11, kind: input, shape index: {}]
  %s12 = inlined_call_operand.vmem [shape: f32[32,32], index: 12, kind: input, shape index: {}]
  %s13 = inlined_call_operand.vmem [shape: f32[1,32], index: 13, kind: input, shape index: {}]
  %s14 = inlined_call_operand.vmem [shape: f32[32,32], index: 14, kind: input, shape index: {}]
  %s15 = inlined_call_operand.vmem [shape: f32[1,32], index: 15, kind: input, shape index: {}]
  %s16 = inlined_call_operand.hbm [shape: f32[2,16,32], index: 16, kind: output, shape index: {}]
  %s17 = sld [smem:[#allocation0]]
  $region74: #{tpu_custom_call.1} parent=0
    _
  %s19 = ssub.s32 1, %s17
  %s20 = scalar_select 0, %s19, %s17
  %v21 = vstv %s6
  %22 = vst [vmem:[#allocation2] sm:$0x1] %v21
  $region1: #{tpu_custom_call.1} parent=0
    #allocation3 [shape = 'u8[16384]{0}', space=vmem, size = 0x4000, scoped, tag = 'output window, operand 0, single buffered']
    #allocation4 [shape = 's32[1]{0}', space=sflag, size = 0x4, scoped, tag = 'scoped memory for tpu_custom_call.1']
    %23 = vsyncpa [#allocation4], 0
    // Predicated region
    $region2: #{tpu_custom_call.1} parent=1 // pred_check
      _
    $region3: #{tpu_custom_call.1} parent=1 // pred_check_branch
      %25 = sbr.rel (0) target = $region5
    $region4: #{tpu_custom_call.1} parent=1 // pred_region
      _
    $region5: #{tpu_custom_call.1} parent=1 // pred_fallthru
      _
    // Predicated region
    $region6: #{tpu_custom_call.1} parent=1 // pred_check
      _
    $region7: #{tpu_custom_call.1} parent=1 // pred_check_branch
      %27 = sbr.rel (0) target = $region9
    $region8: #{tpu_custom_call.1} parent=1 // pred_region
      _
    $region9: #{tpu_custom_call.1} parent=1 // pred_fallthru
      _
    // Predicated region
    $region10: #{tpu_custom_call.1} parent=1 // pred_check
      _
    $region11: #{tpu_custom_call.1} parent=1 // pred_check_branch
      %29 = sbr.rel (0) target = $region13
    $region12: #{tpu_custom_call.1} parent=1 // pred_region
      _
    $region13: #{tpu_custom_call.1} parent=1 // pred_fallthru
      _
    // Predicated region
    $region14: #{tpu_custom_call.1} parent=1 // pred_check
      _
    $region15: #{tpu_custom_call.1} parent=1 // pred_check_branch
      %31 = sbr.rel (0) target = $region17
    $region16: #{tpu_custom_call.1} parent=1 // pred_region
      _
    $region17: #{tpu_custom_call.1} parent=1 // pred_fallthru
      _
    // Predicated region
    $region18: #{tpu_custom_call.1} parent=1 // pred_check
      _
    $region19: #{tpu_custom_call.1} parent=1 // pred_check_branch
      %33 = sbr.rel (0) target = $region21
    $region20: #{tpu_custom_call.1} parent=1 // pred_region
      _
    $region21: #{tpu_custom_call.1} parent=1 // pred_fallthru
      _
    // Predicated region
    $region22: #{tpu_custom_call.1} parent=1 // pred_check
      _
    $region23: #{tpu_custom_call.1} parent=1 // pred_check_branch
      %35 = sbr.rel (0) target = $region25
    $region24: #{tpu_custom_call.1} parent=1 // pred_region
      _
    $region25: #{tpu_custom_call.1} parent=1 // pred_fallthru
      _
    // Predicated region
    $region26: #{tpu_custom_call.1} parent=1 // pred_check
      _
    $region27: #{tpu_custom_call.1} parent=1 // pred_check_branch
      %37 = sbr.rel (0) target = $region29
    $region28: #{tpu_custom_call.1} parent=1 // pred_region
      _
    $region29: #{tpu_custom_call.1} parent=1 // pred_fallthru
      _
    // Predicated region
    $region30: #{tpu_custom_call.1} parent=1 // pred_check
      _
    $region31: #{tpu_custom_call.1} parent=1 // pred_check_branch
      %39 = sbr.rel (0) target = $region33
    $region32: #{tpu_custom_call.1} parent=1 // pred_region
      _
    $region33: #{tpu_custom_call.1} parent=1 // pred_fallthru
      _
    // Predicated region
    $region34: #{tpu_custom_call.1} parent=1 // pred_check
      _
    $region35: #{tpu_custom_call.1} parent=1 // pred_check_branch
      %41 = sbr.rel (0) target = $region37
    $region36: #{tpu_custom_call.1} parent=1 // pred_region
      _
    $region37: #{tpu_custom_call.1} parent=1 // pred_fallthru
      _
    // Predicated region
    $region38: #{tpu_custom_call.1} parent=1 // pred_check
      _
    $region39: #{tpu_custom_call.1} parent=1 // pred_check_branch
      %43 = sbr.rel (0) target = $region41
    $region40: #{tpu_custom_call.1} parent=1 // pred_region
      _
    $region41: #{tpu_custom_call.1} parent=1 // pred_fallthru
      _
    // Predicated region
    $region42: #{tpu_custom_call.1} parent=1 // pred_check
      _
    $region43: #{tpu_custom_call.1} parent=1 // pred_check_branch
      %45 = sbr.rel (0) target = $region45
    $region44: #{tpu_custom_call.1} parent=1 // pred_region
      _
    $region45: #{tpu_custom_call.1} parent=1 // pred_fallthru
      _
    // Predicated region
    $region46: #{tpu_custom_call.1} parent=1 // pred_check
      _
    $region47: #{tpu_custom_call.1} parent=1 // pred_check_branch
      %47 = sbr.rel (0) target = $region49
    $region48: #{tpu_custom_call.1} parent=1 // pred_region
      _
    $region49: #{tpu_custom_call.1} parent=1 // pred_fallthru
      _
    // Predicated region
    $region50: #{tpu_custom_call.1} parent=1 // pred_check
      _
    $region51: #{tpu_custom_call.1} parent=1 // pred_check_branch
      %49 = sbr.rel (0) target = $region53
    $region52: #{tpu_custom_call.1} parent=1 // pred_region
      _
    $region53: #{tpu_custom_call.1} parent=1 // pred_fallthru
      _
    // Predicated region
    $region54: #{tpu_custom_call.1} parent=1 // pred_check
      _
    $region55: #{tpu_custom_call.1} parent=1 // pred_check_branch
      %51 = sbr.rel (0) target = $region57
    $region56: #{tpu_custom_call.1} parent=1 // pred_region
      _
    $region57: #{tpu_custom_call.1} parent=1 // pred_fallthru
      _
    // Predicated region
    $region58: #{tpu_custom_call.1} parent=1 // pred_check
      _
    $region59: #{tpu_custom_call.1} parent=1 // pred_check_branch
      %53 = sbr.rel (0) target = $region61
    $region60: #{tpu_custom_call.1} parent=1 // pred_region
      _
    $region61: #{tpu_custom_call.1} parent=1 // pred_fallthru
      _
    // Predicated region
    $region62: #{tpu_custom_call.1} parent=1 // pred_check
      _
    $region63: #{tpu_custom_call.1} parent=1 // pred_check_branch
      %55 = sbr.rel (0) target = $region65
    $region64: #{tpu_custom_call.1} parent=1 // pred_region
      _
    $region65: #{tpu_custom_call.1} parent=1 // pred_fallthru
      _
    %v56 = vld [vmem:[%s0] sm:$0xff]
    %v57 = vld [vmem:[%s0 + $0x8] sm:$0xff]
    %v58 = vld [vmem:[%s0 + $0x10] sm:$0xff]
    %v59 = vld [vmem:[%s0 + $0x18] sm:$0xff]
    %v60 = vld [vmem:[%s0 + $0x20] sm:$0xff]
    %v61 = vld [vmem:[%s0 + $0x28] sm:$0xff]
    %v62 = vld [vmem:[%s0 + $0x30] sm:$0xff]
    %v63 = vld [vmem:[%s0 + $0x38] sm:$0xff]
    %v64 = vld [vmem:[%s0 + $0x40] sm:$0xff]
    %v65 = vld [vmem:[%s0 + $0x48] sm:$0xff]
    %v66 = vld [vmem:[%s0 + $0x50] sm:$0xff]
    %v67 = vld [vmem:[%s0 + $0x58] sm:$0xff]
    %v68 = vld [vmem:[%s0 + $0x60] sm:$0xff]
    %v69 = vld [vmem:[%s0 + $0x68] sm:$0xff]
    %v70 = vld [vmem:[%s0 + $0x70] sm:$0xff]
    %v71 = vld [vmem:[%s0 + $0x78] sm:$0xff]
    %v72 = vld [vmem:[%s0 + $0x80] sm:$0xff]
    %v73 = vld [vmem:[%s0 + $0x88] sm:$0xff]
    %v74 = vld [vmem:[%s0 + $0x90] sm:$0xff]
    %v75 = vld [vmem:[%s0 + $0x98] sm:$0xff]
    %v76 = vld [vmem:[%s0 + $0xa0] sm:$0xff]
    %v77 = vld [vmem:[%s0 + $0xa8] sm:$0xff]
    %v78 = vld [vmem:[%s0 + $0xb0] sm:$0xff]
    %v79 = vld [vmem:[%s0 + $0xb8] sm:$0xff]
    %v80 = vld [vmem:[%s0 + $0xc0] sm:$0xff]
    %v81 = vld [vmem:[%s0 + $0xc8] sm:$0xff]
    %v82 = vld [vmem:[%s0 + $0xd0] sm:$0xff]
    %v83 = vld [vmem:[%s0 + $0xd8] sm:$0xff]
    %v84 = vld [vmem:[%s0 + $0xe0] sm:$0xff]
    %v85 = vld [vmem:[%s0 + $0xe8] sm:$0xff]
    %v86 = vld [vmem:[%s0 + $0xf0] sm:$0xff]
    %v87 = vld [vmem:[%s0 + $0xf8] sm:$0xff]
    %v88 = vld [vmem:[%s0 + $0x100] sm:$0xff]
    %v89 = vld [vmem:[%s0 + $0x108] sm:$0xff]
    %v90 = vld [vmem:[%s0 + $0x110] sm:$0xff]
    %v91 = vld [vmem:[%s0 + $0x118] sm:$0xff]
    %v92 = vld [vmem:[%s0 + $0x120] sm:$0xff]
    %v93 = vld [vmem:[%s0 + $0x128] sm:$0xff]
    %v94 = vld [vmem:[%s0 + $0x130] sm:$0xff]
    %v95 = vld [vmem:[%s0 + $0x138] sm:$0xff]
    %v96 = vld [vmem:[%s0 + $0x140] sm:$0xff]
    %v97 = vld [vmem:[%s0 + $0x148] sm:$0xff]
    %v98 = vld [vmem:[%s0 + $0x150] sm:$0xff]
    %v99 = vld [vmem:[%s0 + $0x158] sm:$0xff]
    %v100 = vld [vmem:[%s0 + $0x160] sm:$0xff]
    %v101 = vld [vmem:[%s0 + $0x168] sm:$0xff]
    %v102 = vld [vmem:[%s0 + $0x170] sm:$0xff]
    %v103 = vld [vmem:[%s0 + $0x178] sm:$0xff]
    %v104 = vld [vmem:[%s0 + $0x180] sm:$0xff]
    %v105 = vld [vmem:[%s0 + $0x188] sm:$0xff]
    %v106 = vld [vmem:[%s0 + $0x190] sm:$0xff]
    %v107 = vld [vmem:[%s0 + $0x198] sm:$0xff]
    %v108 = vld [vmem:[%s0 + $0x1a0] sm:$0xff]
    %v109 = vld [vmem:[%s0 + $0x1a8] sm:$0xff]
    %v110 = vld [vmem:[%s0 + $0x1b0] sm:$0xff]
    %v111 = vld [vmem:[%s0 + $0x1b8] sm:$0xff]
    %v112 = vld [vmem:[%s0 + $0x1c0] sm:$0xff]
    %v113 = vld [vmem:[%s0 + $0x1c8] sm:$0xff]
    %v114 = vld [vmem:[%s0 + $0x1d0] sm:$0xff]
    %v115 = vld [vmem:[%s0 + $0x1d8] sm:$0xff]
    %v116 = vld [vmem:[%s0 + $0x1e0] sm:$0xff]
    %v117 = vld [vmem:[%s0 + $0x1e8] sm:$0xff]
    %v118 = vld [vmem:[%s0 + $0x1f0] sm:$0xff]
    %v119 = vld [vmem:[%s0 + $0x1f8] sm:$0xff]
    %v120 = vld [vmem:[%s1] sm:$0x3f]
    %v121 = vld [vmem:[%s2] sm:$0x1]
    %v123 = vlaneseq
    %v124 = vshrl.u32 %v123, 7
    %v125 = vsub.s32 0, %v124
    %v126 = vrot.slane %v121, %v125
    %vm128 = vcmask 48128
    %v130 = vsel %vm128, %v56, 0
    %v133 = vsel %vm128, %v57, 0
    %v136 = vsel %vm128, %v58, 0
    %v139 = vsel %vm128, %v59, 0
    %v142 = vsel %vm128, %v60, 0
    %v145 = vsel %vm128, %v61, 0
    %v148 = vsel %vm128, %v62, 0
    %v151 = vsel %vm128, %v63, 0
    %v154 = vsel %vm128, %v64, 0
    %v157 = vsel %vm128, %v65, 0
    %v160 = vsel %vm128, %v66, 0
    %v163 = vsel %vm128, %v67, 0
    %v166 = vsel %vm128, %v68, 0
    %v169 = vsel %vm128, %v69, 0
    %v172 = vsel %vm128, %v70, 0
    %v175 = vsel %vm128, %v71, 0
    %v178 = vsel %vm128, %v72, 0
    %v181 = vsel %vm128, %v73, 0
    %v184 = vsel %vm128, %v74, 0
    %v187 = vsel %vm128, %v75, 0
    %v190 = vsel %vm128, %v76, 0
    %v193 = vsel %vm128, %v77, 0
    %v196 = vsel %vm128, %v78, 0
    %v199 = vsel %vm128, %v79, 0
    %v202 = vsel %vm128, %v80, 0
    %v205 = vsel %vm128, %v81, 0
    %v208 = vsel %vm128, %v82, 0
    %v211 = vsel %vm128, %v83, 0
    %v214 = vsel %vm128, %v84, 0
    %v217 = vsel %vm128, %v85, 0
    %v220 = vsel %vm128, %v86, 0
    %v223 = vsel %vm128, %v87, 0
    %v226 = vsel %vm128, %v88, 0
    %v229 = vsel %vm128, %v89, 0
    %v232 = vsel %vm128, %v90, 0
    %v235 = vsel %vm128, %v91, 0
    %v238 = vsel %vm128, %v92, 0
    %v241 = vsel %vm128, %v93, 0
    %v244 = vsel %vm128, %v94, 0
    %v247 = vsel %vm128, %v95, 0
    %v250 = vsel %vm128, %v96, 0
    %v253 = vsel %vm128, %v97, 0
    %v256 = vsel %vm128, %v98, 0
    %v259 = vsel %vm128, %v99, 0
    %v262 = vsel %vm128, %v100, 0
    %v265 = vsel %vm128, %v101, 0
    %v268 = vsel %vm128, %v102, 0
    %v271 = vsel %vm128, %v103, 0
    %v274 = vsel %vm128, %v104, 0
    %v277 = vsel %vm128, %v105, 0
    %v280 = vsel %vm128, %v106, 0
    %v283 = vsel %vm128, %v107, 0
    %v286 = vsel %vm128, %v108, 0
    %v289 = vsel %vm128, %v109, 0
    %v292 = vsel %vm128, %v110, 0
    %v295 = vsel %vm128, %v111, 0
    %v298 = vsel %vm128, %v112, 0
    %v301 = vsel %vm128, %v113, 0
    %v304 = vsel %vm128, %v114, 0
    %v307 = vsel %vm128, %v115, 0
    %v310 = vsel %vm128, %v116, 0
    %v313 = vsel %vm128, %v117, 0
    %v316 = vsel %vm128, %v118, 0
    %v319 = vsel %vm128, %v119, 0
    %vm321 = vcmask 1045504
    %v323 = vsel %vm321, %v120, 0
    %325 = vmatprep.subr.mxu0 0.0
    %326 = vmatpush1.msra.mxu0 %v323
    %327 = vmatprep.subr.mxu0 0.0
    %328 = vmatpush1.msra.mxu0 0.0
    %329 = vmatprep.subr.mxu0 0.0
    %330 = vmatpush1.msra.mxu0 0.0
    %331 = vmatprep.subr.mxu0 0.0
    %332 = vmatpush1.msra.mxu0 0.0
    %333 = vmatprep.subr.mxu0 0.0
    %334 = vmatpush1.msra.mxu0 0.0
    %335 = vmatprep.subr.mxu0 0.0
    %336 = vmatpush1.msra.mxu0 0.0
    %337 = vmatprep.subr.mxu0 0.0
    %338 = vmatpush1.msra.mxu0 0.0
    %339 = vmatprep.subr.mxu0 0.0
    %340 = vmatpush1.msra.mxu0 0.0
    %341 = vmatprep.subr.mxu0 0.0
    %342 = vmatpush1.msra.mxu0 0.0
    %343 = vmatprep.subr.mxu0 0.0
    %344 = vmatpush1.msra.mxu0 0.0
    %345 = vmatprep.subr.mxu0 0.0
    %346 = vmatpush1.msra.mxu0 0.0
    %347 = vmatprep.subr.mxu0 0.0
    %348 = vmatpush1.msra.mxu0 0.0
    %349 = vmatprep.subr.mxu0 0.0
    %350 = vmatpush1.msra.mxu0 0.0
    %351 = vmatprep.subr.mxu0 0.0
    %352 = vmatpush1.msra.mxu0 0.0
    %353 = vmatprep.subr.mxu0 0.0
    %354 = vmatpush1.msra.mxu0 0.0
    %355 = vmatprep.subr.mxu0 0.0
    %356 = vmatpush1.msra.mxu0 0.0
    %357 = vmatprep.subr.mxu0 0.0
    %358 = vmatpush1.msra.mxu0 0.0
    %359 = vmatprep.subr.mxu0 0.0
    %360 = vmatpush1.msra.mxu0 0.0
    %361 = vmatprep.subr.mxu0 0.0
    %362 = vmatpush1.msra.mxu0 0.0
    %363 = vmatprep.subr.mxu0 0.0
    %364 = vmatpush1.msra.mxu0 0.0
    %365 = vmatprep.subr.mxu0 0.0
    %366 = vmatpush1.msra.mxu0 0.0
    %367 = vmatprep.subr.mxu0 0.0
    %368 = vmatpush1.msra.mxu0 0.0
    %369 = vmatprep.subr.mxu0 0.0
    %370 = vmatpush1.msra.mxu0 0.0
    %371 = vmatprep.subr.mxu0 0.0
    %372 = vmatpush1.msra.mxu0 0.0
    %373 = vmatprep.subr.mxu0 0.0
    %374 = vmatpush1.msra.mxu0 0.0
    %375 = vmatprep.subr.mxu0 0.0
    %376 = vmatpush1.msra.mxu0 0.0
    %377 = vmatprep.subr.mxu0 0.0
    %378 = vmatpush1.msra.mxu0 0.0
    %379 = vmatprep.subr.mxu0 0.0
    %380 = vmatpush1.msra.mxu0 0.0
    %381 = vmatprep.subr.mxu0 0.0
    %382 = vmatpush1.msra.mxu0 0.0
    %383 = vmatprep.subr.mxu0 0.0
    %384 = vmatpush1.msra.mxu0 0.0
    %385 = vmatprep.subr.mxu0 0.0
    %386 = vmatpush1.msra.mxu0 0.0
    %387 = vmatprep.subr.mxu0 0.0
    %388 = vmatpush1.msra.mxu0 0.0
    %389 = vmatprep.mubr.f32.mxu0 0.0
    %390 = vmatmul.mubr.f32.gmra.mrb[0].mxu0 %v130
    %v391 = vpop.f32.mrb[0].mxu0
    %v392 = vadd.f32 %v126, %v391
    %v393 = vpop.f32.mrb[0].mxu0
    %394 = vmatprep.mubr.f32.mxu0 0.0
    %395 = vmatmul.mubr.f32.gmra.mrb[0].mxu0 %v133
    %v396 = vpop.f32.mrb[0].mxu0
    %v397 = vadd.f32 %v126, %v396
    %v398 = vpop.f32.mrb[0].mxu0
    %399 = vmatprep.mubr.f32.mxu0 0.0
    %400 = vmatmul.mubr.f32.gmra.mrb[0].mxu0 %v136
    %v401 = vpop.f32.mrb[0].mxu0
    %v402 = vadd.f32 %v126, %v401
    %v403 = vpop.f32.mrb[0].mxu0
    %404 = vmatprep.mubr.f32.mxu0 0.0
    %405 = vmatmul.mubr.f32.gmra.mrb[0].mxu0 %v139
    %v406 = vpop.f32.mrb[0].mxu0
    %v407 = vadd.f32 %v126, %v406
    %v408 = vpop.f32.mrb[0].mxu0
    %409 = vmatprep.mubr.f32.mxu0 0.0
    %410 = vmatmul.mubr.f32.gmra.mrb[0].mxu0 %v142
    %v411 = vpop.f32.mrb[0].mxu0
    %v412 = vadd.f32 %v126, %v411
    %v413 = vpop.f32.mrb[0].mxu0
    %414 = vmatprep.mubr.f32.mxu0 0.0
    %415 = vmatmul.mubr.f32.gmra.mrb[0].mxu0 %v145
    %v416 = vpop.f32.mrb[0].mxu0
    %v417 = vadd.f32 %v126, %v416
    %v418 = vpop.f32.mrb[0].mxu0
    %419 = vmatprep.mubr.f32.mxu0 0.0
    %420 = vmatmul.mubr.f32.gmra.mrb[0].mxu0 %v148
    %v421 = vpop.f32.mrb[0].mxu0
    %v422 = vadd.f32 %v126, %v421
    %v423 = vpop.f32.mrb[0].mxu0
    %424 = vmatprep.mubr.f32.mxu0 0.0
    %425 = vmatmul.mubr.f32.gmra.mrb[0].mxu0 %v151
    %v426 = vpop.f32.mrb[0].mxu0
    %v427 = vadd.f32 %v126, %v426
    %v428 = vpop.f32.mrb[0].mxu0
    %429 = vmatprep.mubr.f32.mxu0 0.0
    %430 = vmatmul.mubr.f32.gmra.mrb[0].mxu0 %v154
    %v431 = vpop.f32.mrb[0].mxu0
    %v432 = vadd.f32 %v126, %v431
    %v433 = vpop.f32.mrb[0].mxu0
    %434 = vmatprep.mubr.f32.mxu0 0.0
    %435 = vmatmul.mubr.f32.gmra.mrb[0].mxu0 %v157
    %v436 = vpop.f32.mrb[0].mxu0
    %v437 = vadd.f32 %v126, %v436
    %v438 = vpop.f32.mrb[0].mxu0
    %439 = vmatprep.mubr.f32.mxu0 0.0
    %440 = vmatmul.mubr.f32.gmra.mrb[0].mxu0 %v160
    %v441 = vpop.f32.mrb[0].mxu0
    %v442 = vadd.f32 %v126, %v441
    %v443 = vpop.f32.mrb[0].mxu0
    %444 = vmatprep.mubr.f32.mxu0 0.0
    %445 = vmatmul.mubr.f32.gmra.mrb[0].mxu0 %v163
    %v446 = vpop.f32.mrb[0].mxu0
    %v447 = vadd.f32 %v126, %v446
    %v448 = vpop.f32.mrb[0].mxu0
    %449 = vmatprep.mubr.f32.mxu0 0.0
    %450 = vmatmul.mubr.f32.gmra.mrb[0].mxu0 %v166
    %v451 = vpop.f32.mrb[0].mxu0
    %v452 = vadd.f32 %v126, %v451
    %v453 = vpop.f32.mrb[0].mxu0
    %454 = vmatprep.mubr.f32.mxu0 0.0
    %455 = vmatmul.mubr.f32.gmra.mrb[0].mxu0 %v169
    %v456 = vpop.f32.mrb[0].mxu0
    %v457 = vadd.f32 %v126, %v456
    %v458 = vpop.f32.mrb[0].mxu0
    %459 = vmatprep.mubr.f32.mxu0 0.0
    %460 = vmatmul.mubr.f32.gmra.mrb[0].mxu0 %v172
    %v461 = vpop.f32.mrb[0].mxu0
    %v462 = vadd.f32 %v126, %v461
    %v463 = vpop.f32.mrb[0].mxu0
    %464 = vmatprep.mubr.f32.mxu0 0.0
    %465 = vmatmul.mubr.f32.gmra.mrb[0].mxu0 %v175
    %v466 = vpop.f32.mrb[0].mxu0
    %v467 = vadd.f32 %v126, %v466
    %v468 = vpop.f32.mrb[0].mxu0
    %469 = vmatprep.mubr.f32.mxu0 0.0
    %470 = vmatmul.mubr.f32.gmra.mrb[0].mxu0 %v178
    %v471 = vpop.f32.mrb[0].mxu0
    %v472 = vadd.f32 %v126, %v471
    %v473 = vpop.f32.mrb[0].mxu0
    %474 = vmatprep.mubr.f32.mxu0 0.0
    %475 = vmatmul.mubr.f32.gmra.mrb[0].mxu0 %v181
    %v476 = vpop.f32.mrb[0].mxu0
    %v477 = vadd.f32 %v126, %v476
    %v478 = vpop.f32.mrb[0].mxu0
    %479 = vmatprep.mubr.f32.mxu0 0.0
    %480 = vmatmul.mubr.f32.gmra.mrb[0].mxu0 %v184
    %v481 = vpop.f32.mrb[0].mxu0
    %v482 = vadd.f32 %v126, %v481
    %v483 = vpop.f32.mrb[0].mxu0
    %484 = vmatprep.mubr.f32.mxu0 0.0
    %485 = vmatmul.mubr.f32.gmra.mrb[0].mxu0 %v187
    %v486 = vpop.f32.mrb[0].mxu0
    %v487 = vadd.f32 %v126, %v486
    %v488 = vpop.f32.mrb[0].mxu0
    %489 = vmatprep.mubr.f32.mxu0 0.0
    %490 = vmatmul.mubr.f32.gmra.mrb[0].mxu0 %v190
    %v491 = vpop.f32.mrb[0].mxu0
    %v492 = vadd.f32 %v126, %v491
    %v493 = vpop.f32.mrb[0].mxu0
    %494 = vmatprep.mubr.f32.mxu0 0.0
    %495 = vmatmul.mubr.f32.gmra.mrb[0].mxu0 %v193
    %v496 = vpop.f32.mrb[0].mxu0
    %v497 = vadd.f32 %v126, %v496
    %v498 = vpop.f32.mrb[0].mxu0
    %499 = vmatprep.mubr.f32.mxu0 0.0
    %500 = vmatmul.mubr.f32.gmra.mrb[0].mxu0 %v196
    %v501 = vpop.f32.mrb[0].mxu0
    %v502 = vadd.f32 %v126, %v501
    %v503 = vpop.f32.mrb[0].mxu0
    %504 = vmatprep.mubr.f32.mxu0 0.0
    %505 = vmatmul.mubr.f32.gmra.mrb[0].mxu0 %v199
    %v506 = vpop.f32.mrb[0].mxu0
    %v507 = vadd.f32 %v126, %v506
    %v508 = vpop.f32.mrb[0].mxu0
    %509 = vmatprep.mubr.f32.mxu0 0.0
    %510 = vmatmul.mubr.f32.gmra.mrb[0].mxu0 %v202
    %v511 = vpop.f32.mrb[0].mxu0
    %v512 = vadd.f32 %v126, %v511
    %v513 = vpop.f32.mrb[0].mxu0
    %514 = vmatprep.mubr.f32.mxu0 0.0
    %515 = vmatmul.mubr.f32.gmra.mrb[0].mxu0 %v205
    %v516 = vpop.f32.mrb[0].mxu0
    %v517 = vadd.f32 %v126, %v516
    %v518 = vpop.f32.mrb[0].mxu0
    %519 = vmatprep.mubr.f32.mxu0 0.0
    %520 = vmatmul.mubr.f32.gmra.mrb[0].mxu0 %v208
    %v521 = vpop.f32.mrb[0].mxu0
    %v522 = vadd.f32 %v126, %v521
    %v523 = vpop.f32.mrb[0].mxu0
    %524 = vmatprep.mubr.f32.mxu0 0.0
    %525 = vmatmul.mubr.f32.gmra.mrb[0].mxu0 %v211
    %v526 = vpop.f32.mrb[0].mxu0
    %v527 = vadd.f32 %v126, %v526
    %v528 = vpop.f32.mrb[0].mxu0
    %529 = vmatprep.mubr.f32.mxu0 0.0
    %530 = vmatmul.mubr.f32.gmra.mrb[0].mxu0 %v214
    %v531 = vpop.f32.mrb[0].mxu0
    %v532 = vadd.f32 %v126, %v531
    %v533 = vpop.f32.mrb[0].mxu0
    %534 = vmatprep.mubr.f32.mxu0 0.0
    %535 = vmatmul.mubr.f32.gmra.mrb[0].mxu0 %v217
    %v536 = vpop.f32.mrb[0].mxu0
    %v537 = vadd.f32 %v126, %v536
    %v538 = vpop.f32.mrb[0].mxu0
    %539 = vmatprep.mubr.f32.mxu0 0.0
    %540 = vmatmul.mubr.f32.gmra.mrb[0].mxu0 %v220
    %v541 = vpop.f32.mrb[0].mxu0
    %v542 = vadd.f32 %v126, %v541
    %v543 = vpop.f32.mrb[0].mxu0
    %544 = vmatprep.mubr.f32.mxu0 0.0
    %545 = vmatmul.mubr.f32.gmra.mrb[0].mxu0 %v223
    %v546 = vpop.f32.mrb[0].mxu0
    %v547 = vadd.f32 %v126, %v546
    %v548 = vpop.f32.mrb[0].mxu0
    %549 = vmatprep.mubr.f32.mxu0 0.0
    %550 = vmatmul.mubr.f32.gmra.mrb[0].mxu0 %v226
    %v551 = vpop.f32.mrb[0].mxu0
    %v552 = vadd.f32 %v126, %v551
    %v553 = vpop.f32.mrb[0].mxu0
    %554 = vmatprep.mubr.f32.mxu0 0.0
    %555 = vmatmul.mubr.f32.gmra.mrb[0].mxu0 %v229
    %v556 = vpop.f32.mrb[0].mxu0
    %v557 = vadd.f32 %v126, %v556
    %v558 = vpop.f32.mrb[0].mxu0
    %559 = vmatprep.mubr.f32.mxu0 0.0
    %560 = vmatmul.mubr.f32.gmra.mrb[0].mxu0 %v232
    %v561 = vpop.f32.mrb[0].mxu0
    %v562 = vadd.f32 %v126, %v561
    %v563 = vpop.f32.mrb[0].mxu0
    %564 = vmatprep.mubr.f32.mxu0 0.0
    %565 = vmatmul.mubr.f32.gmra.mrb[0].mxu0 %v235
    %v566 = vpop.f32.mrb[0].mxu0
    %v567 = vadd.f32 %v126, %v566
    %v568 = vpop.f32.mrb[0].mxu0
    %569 = vmatprep.mubr.f32.mxu0 0.0
    %570 = vmatmul.mubr.f32.gmra.mrb[0].mxu0 %v238
    %v571 = vpop.f32.mrb[0].mxu0
    %v572 = vadd.f32 %v126, %v571
    %v573 = vpop.f32.mrb[0].mxu0
    %574 = vmatprep.mubr.f32.mxu0 0.0
    %575 = vmatmul.mubr.f32.gmra.mrb[0].mxu0 %v241
    %v576 = vpop.f32.mrb[0].mxu0
    %v577 = vadd.f32 %v126, %v576
    %v578 = vpop.f32.mrb[0].mxu0
    %579 = vmatprep.mubr.f32.mxu0 0.0
    %580 = vmatmul.mubr.f32.gmra.mrb[0].mxu0 %v244
    %v581 = vpop.f32.mrb[0].mxu0
    %v582 = vadd.f32 %v126, %v581
    %v583 = vpop.f32.mrb[0].mxu0
    %584 = vmatprep.mubr.f32.mxu0 0.0
    %585 = vmatmul.mubr.f32.gmra.mrb[0].mxu0 %v247
    %v586 = vpop.f32.mrb[0].mxu0
    %v587 = vadd.f32 %v126, %v586
    %v588 = vpop.f32.mrb[0].mxu0
    %589 = vmatprep.mubr.f32.mxu0 0.0
    %590 = vmatmul.mubr.f32.gmra.mrb[0].mxu0 %v250
    %v591 = vpop.f32.mrb[0].mxu0
    %v592 = vadd.f32 %v126, %v591
    %v593 = vpop.f32.mrb[0].mxu0
    %594 = vmatprep.mubr.f32.mxu0 0.0
    %595 = vmatmul.mubr.f32.gmra.mrb[0].mxu0 %v253
    %v596 = vpop.f32.mrb[0].mxu0
    %v597 = vadd.f32 %v126, %v596
    %v598 = vpop.f32.mrb[0].mxu0
    %599 = vmatprep.mubr.f32.mxu0 0.0
    %600 = vmatmul.mubr.f32.gmra.mrb[0].mxu0 %v256
    %v601 = vpop.f32.mrb[0].mxu0
    %v602 = vadd.f32 %v126, %v601
    %v603 = vpop.f32.mrb[0].mxu0
    %604 = vmatprep.mubr.f32.mxu0 0.0
    %605 = vmatmul.mubr.f32.gmra.mrb[0].mxu0 %v259
    %v606 = vpop.f32.mrb[0].mxu0
    %v607 = vadd.f32 %v126, %v606
    %v608 = vpop.f32.mrb[0].mxu0
    %609 = vmatprep.mubr.f32.mxu0 0.0
    %610 = vmatmul.mubr.f32.gmra.mrb[0].mxu0 %v262
    %v611 = vpop.f32.mrb[0].mxu0
    %v612 = vadd.f32 %v126, %v611
    %v613 = vpop.f32.mrb[0].mxu0
    %614 = vmatprep.mubr.f32.mxu0 0.0
    %615 = vmatmul.mubr.f32.gmra.mrb[0].mxu0 %v265
    %v616 = vpop.f32.mrb[0].mxu0
    %v617 = vadd.f32 %v126, %v616
    %v618 = vpop.f32.mrb[0].mxu0
    %619 = vmatprep.mubr.f32.mxu0 0.0
    %620 = vmatmul.mubr.f32.gmra.mrb[0].mxu0 %v268
    %v621 = vpop.f32.mrb[0].mxu0
    %v622 = vadd.f32 %v126, %v621
    %v623 = vpop.f32.mrb[0].mxu0
    %624 = vmatprep.mubr.f32.mxu0 0.0
    %625 = vmatmul.mubr.f32.gmra.mrb[0].mxu0 %v271
    %v626 = vpop.f32.mrb[0].mxu0
    %v627 = vadd.f32 %v126, %v626
    %v628 = vpop.f32.mrb[0].mxu0
    %629 = vmatprep.mubr.f32.mxu0 0.0
    %630 = vmatmul.mubr.f32.gmra.mrb[0].mxu0 %v274
    %v631 = vpop.f32.mrb[0].mxu0
    %v632 = vadd.f32 %v126, %v631
    %v633 = vpop.f32.mrb[0].mxu0
    %634 = vmatprep.mubr.f32.mxu0 0.0
    %635 = vmatmul.mubr.f32.gmra.mrb[0].mxu0 %v277
    %v636 = vpop.f32.mrb[0].mxu0
    %v637 = vadd.f32 %v126, %v636
    %v638 = vpop.f32.mrb[0].mxu0
    %639 = vmatprep.mubr.f32.mxu0 0.0
    %640 = vmatmul.mubr.f32.gmra.mrb[0].mxu0 %v280
    %v641 = vpop.f32.mrb[0].mxu0
    %v642 = vadd.f32 %v126, %v641
    %v643 = vpop.f32.mrb[0].mxu0
    %644 = vmatprep.mubr.f32.mxu0 0.0
    %645 = vmatmul.mubr.f32.gmra.mrb[0].mxu0 %v283
    %v646 = vpop.f32.mrb[0].mxu0
    %v647 = vadd.f32 %v126, %v646
    %v648 = vpop.f32.mrb[0].mxu0
    %649 = vmatprep.mubr.f32.mxu0 0.0
    %650 = vmatmul.mubr.f32.gmra.mrb[0].mxu0 %v286
    %v651 = vpop.f32.mrb[0].mxu0
    %v652 = vadd.f32 %v126, %v651
    %v653 = vpop.f32.mrb[0].mxu0
    %654 = vmatprep.mubr.f32.mxu0 0.0
    %655 = vmatmul.mubr.f32.gmra.mrb[0].mxu0 %v289
    %v656 = vpop.f32.mrb[0].mxu0
    %v657 = vadd.f32 %v126, %v656
    %v658 = vpop.f32.mrb[0].mxu0
    %659 = vmatprep.mubr.f32.mxu0 0.0
    %660 = vmatmul.mubr.f32.gmra.mrb[0].mxu0 %v292
    %v661 = vpop.f32.mrb[0].mxu0
    %v662 = vadd.f32 %v126, %v661
    %v663 = vpop.f32.mrb[0].mxu0
    %664 = vmatprep.mubr.f32.mxu0 0.0
    %665 = vmatmul.mubr.f32.gmra.mrb[0].mxu0 %v295
    %v666 = vpop.f32.mrb[0].mxu0
    %v667 = vadd.f32 %v126, %v666
    %v668 = vpop.f32.mrb[0].mxu0
    %669 = vmatprep.mubr.f32.mxu0 0.0
    %670 = vmatmul.mubr.f32.gmra.mrb[0].mxu0 %v298
    %v671 = vpop.f32.mrb[0].mxu0
    %v672 = vadd.f32 %v126, %v671
    %v673 = vpop.f32.mrb[0].mxu0
    %674 = vmatprep.mubr.f32.mxu0 0.0
    %675 = vmatmul.mubr.f32.gmra.mrb[0].mxu0 %v301
    %v676 = vpop.f32.mrb[0].mxu0
    %v677 = vadd.f32 %v126, %v676
    %v678 = vpop.f32.mrb[0].mxu0
    %679 = vmatprep.mubr.f32.mxu0 0.0
    %680 = vmatmul.mubr.f32.gmra.mrb[0].mxu0 %v304
    %v681 = vpop.f32.mrb[0].mxu0
    %v682 = vadd.f32 %v126, %v681
    %v683 = vpop.f32.mrb[0].mxu0
    %684 = vmatprep.mubr.f32.mxu0 0.0
    %685 = vmatmul.mubr.f32.gmra.mrb[0].mxu0 %v307
    %v686 = vpop.f32.mrb[0].mxu0
    %v687 = vadd.f32 %v126, %v686
    %v688 = vpop.f32.mrb[0].mxu0
    %689 = vmatprep.mubr.f32.mxu0 0.0
    %690 = vmatmul.mubr.f32.gmra.mrb[0].mxu0 %v310
    %v691 = vpop.f32.mrb[0].mxu0
    %v692 = vadd.f32 %v126, %v691
    %v693 = vpop.f32.mrb[0].mxu0
    %694 = vmatprep.mubr.f32.mxu0 0.0
    %695 = vmatmul.mubr.f32.gmra.mrb[0].mxu0 %v313
    %v696 = vpop.f32.mrb[0].mxu0
    %v697 = vadd.f32 %v126, %v696
    %v698 = vpop.f32.mrb[0].mxu0
    %699 = vmatprep.mubr.f32.mxu0 0.0
    %700 = vmatmul.mubr.f32.gmra.mrb[0].mxu0 %v316
    %v701 = vpop.f32.mrb[0].mxu0
    %v702 = vadd.f32 %v126, %v701
    %v703 = vpop.f32.mrb[0].mxu0
    %704 = vmatprep.mubr.f32.mxu0 0.0
    %705 = vmatmul.mubr.f32.gmra.mrb[0].mxu0 %v319
    %v706 = vpop.f32.mrb[0].mxu0
    %v707 = vadd.f32 %v126, %v706
    %v708 = vpop.f32.mrb[0].mxu0
    %709 = vdwg.mxu0
    %v710 = vmax.f32 %v392, 0.0
    %v711 = vmax.f32 %v397, 0.0
    %v712 = vmax.f32 %v402, 0.0
    %v713 = vmax.f32 %v407, 0.0
    %v714 = vmax.f32 %v412, 0.0
    %v715 = vmax.f32 %v417, 0.0
    %v716 = vmax.f32 %v422, 0.0
    %v717 = vmax.f32 %v427, 0.0
    %v718 = vmax.f32 %v432, 0.0
    %v719 = vmax.f32 %v437, 0.0
    %v720 = vmax.f32 %v442, 0.0
    %v721 = vmax.f32 %v447, 0.0
    %v722 = vmax.f32 %v452, 0.0
    %v723 = vmax.f32 %v457, 0.0
    %v724 = vmax.f32 %v462, 0.0
    %v725 = vmax.f32 %v467, 0.0
    %v726 = vmax.f32 %v472, 0.0
    %v727 = vmax.f32 %v477, 0.0
    %v728 = vmax.f32 %v482, 0.0
    %v729 = vmax.f32 %v487, 0.0
    %v730 = vmax.f32 %v492, 0.0
    %v731 = vmax.f32 %v497, 0.0
    %v732 = vmax.f32 %v502, 0.0
    %v733 = vmax.f32 %v507, 0.0
    %v734 = vmax.f32 %v512, 0.0
    %v735 = vmax.f32 %v517, 0.0
    %v736 = vmax.f32 %v522, 0.0
    %v737 = vmax.f32 %v527, 0.0
    %v738 = vmax.f32 %v532, 0.0
    %v739 = vmax.f32 %v537, 0.0
    %v740 = vmax.f32 %v542, 0.0
    %v741 = vmax.f32 %v547, 0.0
    %v742 = vmax.f32 %v552, 0.0
    %v743 = vmax.f32 %v557, 0.0
    %v744 = vmax.f32 %v562, 0.0
    %v745 = vmax.f32 %v567, 0.0
    %v746 = vmax.f32 %v572, 0.0
    %v747 = vmax.f32 %v577, 0.0
    %v748 = vmax.f32 %v582, 0.0
    %v749 = vmax.f32 %v587, 0.0
    %v750 = vmax.f32 %v592, 0.0
    %v751 = vmax.f32 %v597, 0.0
    %v752 = vmax.f32 %v602, 0.0
    %v753 = vmax.f32 %v607, 0.0
    %v754 = vmax.f32 %v612, 0.0
    %v755 = vmax.f32 %v617, 0.0
    %v756 = vmax.f32 %v622, 0.0
    %v757 = vmax.f32 %v627, 0.0
    %v758 = vmax.f32 %v632, 0.0
    %v759 = vmax.f32 %v637, 0.0
    %v760 = vmax.f32 %v642, 0.0
    %v761 = vmax.f32 %v647, 0.0
    %v762 = vmax.f32 %v652, 0.0
    %v763 = vmax.f32 %v657, 0.0
    %v764 = vmax.f32 %v662, 0.0
    %v765 = vmax.f32 %v667, 0.0
    %v766 = vmax.f32 %v672, 0.0
    %v767 = vmax.f32 %v677, 0.0
    %v768 = vmax.f32 %v682, 0.0
    %v769 = vmax.f32 %v687, 0.0
    %v770 = vmax.f32 %v692, 0.0
    %v771 = vmax.f32 %v697, 0.0
    %v772 = vmax.f32 %v702, 0.0
    %v773 = vmax.f32 %v707, 0.0
    %v774 = vld [vmem:[%s3] sm:$0xff]
    %v775 = vld [vmem:[%s3 + $0x8] sm:$0xff]
    %v776 = vld [vmem:[%s3 + $0x10] sm:$0xff]
    %v777 = vld [vmem:[%s3 + $0x18] sm:$0xff]
    %v778 = vld [vmem:[%s3 + $0x20] sm:$0xff]
    %v779 = vld [vmem:[%s3 + $0x28] sm:$0xff]
    %v780 = vld [vmem:[%s3 + $0x30] sm:$0xff]
    %v781 = vld [vmem:[%s3 + $0x38] sm:$0xff]
    %v782 = vld [vmem:[%s4] sm:$0x1]
    %v784 = vlaneseq
    %v785 = vshrl.u32 %v784, 7
    %v786 = vsub.s32 0, %v785
    %v787 = vrot.slane %v782, %v786
    %vm789 = vcmask 523264
    %v791 = vsel %vm789, %v710, 0
    %v794 = vsel %vm789, %v711, 0
    %v797 = vsel %vm789, %v712, 0
    %v800 = vsel %vm789, %v713, 0
    %v803 = vsel %vm789, %v714, 0
    %v806 = vsel %vm789, %v715, 0
    %v809 = vsel %vm789, %v716, 0
    %v812 = vsel %vm789, %v717, 0
    %v815 = vsel %vm789, %v718, 0
    %v818 = vsel %vm789, %v719, 0
    %v821 = vsel %vm789, %v720, 0
    %v824 = vsel %vm789, %v721, 0
    %v827 = vsel %vm789, %v722, 0
    %v830 = vsel %vm789, %v723, 0
    %v833 = vsel %vm789, %v724, 0
    %v836 = vsel %vm789, %v725, 0
    %v839 = vsel %vm789, %v726, 0
    %v842 = vsel %vm789, %v727, 0
    %v845 = vsel %vm789, %v728, 0
    %v848 = vsel %vm789, %v729, 0
    %v851 = vsel %vm789, %v730, 0
    %v854 = vsel %vm789, %v731, 0
    %v857 = vsel %vm789, %v732, 0
    %v860 = vsel %vm789, %v733, 0
    %v863 = vsel %vm789, %v734, 0
    %v866 = vsel %vm789, %v735, 0
    %v869 = vsel %vm789, %v736, 0
    %v872 = vsel %vm789, %v737, 0
    %v875 = vsel %vm789, %v738, 0
    %v878 = vsel %vm789, %v739, 0
    %v881 = vsel %vm789, %v740, 0
    %v884 = vsel %vm789, %v741, 0
    %v887 = vsel %vm789, %v742, 0
    %v890 = vsel %vm789, %v743, 0
    %v893 = vsel %vm789, %v744, 0
    %v896 = vsel %vm789, %v745, 0
    %v899 = vsel %vm789, %v746, 0
    %v902 = vsel %vm789, %v747, 0
    %v905 = vsel %vm789, %v748, 0
    %v908 = vsel %vm789, %v749, 0
    %v911 = vsel %vm789, %v750, 0
    %v914 = vsel %vm789, %v751, 0
    %v917 = vsel %vm789, %v752, 0
    %v920 = vsel %vm789, %v753, 0
    %v923 = vsel %vm789, %v754, 0
    %v926 = vsel %vm789, %v755, 0
    %v929 = vsel %vm789, %v756, 0
    %v932 = vsel %vm789, %v757, 0
    %v935 = vsel %vm789, %v758, 0
    %v938 = vsel %vm789, %v759, 0
    %v941 = vsel %vm789, %v760, 0
    %v944 = vsel %vm789, %v761, 0
    %v947 = vsel %vm789, %v762, 0
    %v950 = vsel %vm789, %v763, 0
    %v953 = vsel %vm789, %v764, 0
    %v956 = vsel %vm789, %v765, 0
    %v959 = vsel %vm789, %v766, 0
    %v962 = vsel %vm789, %v767, 0
    %v965 = vsel %vm789, %v768, 0
    %v968 = vsel %vm789, %v769, 0
    %v971 = vsel %vm789, %v770, 0
    %v974 = vsel %vm789, %v771, 0
    %v977 = vsel %vm789, %v772, 0
    %v980 = vsel %vm789, %v773, 0
    %982 = vmatprep.subr.mxu0 0.0
    %983 = vmatpush1.msra.mxu0 %v774
    %984 = vmatprep.subr.mxu0 0.0
    %985 = vmatpush1.msra.mxu0 %v775
    %986 = vmatprep.subr.mxu0 0.0
    %987 = vmatpush1.msra.mxu0 %v776
    %988 = vmatprep.subr.mxu0 0.0
    %989 = vmatpush1.msra.mxu0 %v777
    %990 = vmatprep.subr.mxu0 0.0
    %991 = vmatpush1.msra.mxu0 %v778
    %992 = vmatprep.subr.mxu0 0.0
    %993 = vmatpush1.msra.mxu0 %v779
    %994 = vmatprep.subr.mxu0 0.0
    %995 = vmatpush1.msra.mxu0 %v780
    %996 = vmatprep.subr.mxu0 0.0
    %997 = vmatpush1.msra.mxu0 %v781
    %998 = vmatprep.subr.mxu0 0.0
    %999 = vmatpush1.msra.mxu0 0.0
    %1000 = vmatprep.subr.mxu0 0.0
    %1001 = vmatpush1.msra.mxu0 0.0
    %1002 = vmatprep.subr.mxu0 0.0
    %1003 = vmatpush1.msra.mxu0 0.0
    %1004 = vmatprep.subr.mxu0 0.0
    %1005 = vmatpush1.msra.mxu0 0.0
    %1006 = vmatprep.subr.mxu0 0.0
    %1007 = vmatpush1.msra.mxu0 0.0
    %1008 = vmatprep.subr.mxu0 0.0
    %1009 = vmatpush1.msra.mxu0 0.0
    %1010 = vmatprep.subr.mxu0 0.0
    %1011 = vmatpush1.msra.mxu0 0.0
    %1012 = vmatprep.subr.mxu0 0.0
    %1013 = vmatpush1.msra.mxu0 0.0
    %1014 = vmatprep.subr.mxu0 0.0
    %1015 = vmatpush1.msra.mxu0 0.0
    %1016 = vmatprep.subr.mxu0 0.0
    %1017 = vmatpush1.msra.mxu0 0.0
    %1018 = vmatprep.subr.mxu0 0.0
    %1019 = vmatpush1.msra.mxu0 0.0
    %1020 = vmatprep.subr.mxu0 0.0
    %1021 = vmatpush1.msra.mxu0 0.0
    %1022 = vmatprep.subr.mxu0 0.0
    %1023 = vmatpush1.msra.mxu0 0.0
    %1024 = vmatprep.subr.mxu0 0.0
    %1025 = vmatpush1.msra.mxu0 0.0
    %1026 = vmatprep.subr.mxu0 0.0
    %1027 = vmatpush1.msra.mxu0 0.0
    %1028 = vmatprep.subr.mxu0 0.0
    %1029 = vmatpush1.msra.mxu0 0.0
    %1030 = vmatprep.subr.mxu0 0.0
    %1031 = vmatpush1.msra.mxu0 0.0
    %1032 = vmatprep.subr.mxu0 0.0
    %1033 = vmatpush1.msra.mxu0 0.0
    %1034 = vmatprep.subr.mxu0 0.0
    %1035 = vmatpush1.msra.mxu0 0.0
    %1036 = vmatprep.subr.mxu0 0.0
    %1037 = vmatpush1.msra.mxu0 0.0
    %1038 = vmatprep.subr.mxu0 0.0
    %1039 = vmatpush1.msra.mxu0 0.0
    %1040 = vmatprep.subr.mxu0 0.0
    %1041 = vmatpush1.msra.mxu0 0.0
    %1042 = vmatprep.subr.mxu0 0.0
    %1043 = vmatpush1.msra.mxu0 0.0
    %1044 = vmatprep.subr.mxu0 0.0
    %1045 = vmatpush1.msra.mxu0 0.0
    %1046 = vmatprep.mubr.f32.mxu0 0.0
    %1047 = vmatmul.mubr.f32.gmra.mrb[0].mxu0 %v791
    %v1048 = vpop.f32.mrb[0].mxu0
    %v1049 = vadd.f32 %v787, %v1048
    %v1050 = vpop.f32.mrb[0].mxu0
    %1051 = vmatprep.mubr.f32.mxu0 0.0
    %1052 = vmatmul.mubr.f32.gmra.mrb[0].mxu0 %v794
    %v1053 = vpop.f32.mrb[0].mxu0
    %v1054 = vadd.f32 %v787, %v1053
    %v1055 = vpop.f32.mrb[0].mxu0
    %1056 = vmatprep.mubr.f32.mxu0 0.0
    %1057 = vmatmul.mubr.f32.gmra.mrb[0].mxu0 %v797
    %v1058 = vpop.f32.mrb[0].mxu0
    %v1059 = vadd.f32 %v787, %v1058
    %v1060 = vpop.f32.mrb[0].mxu0
    %1061 = vmatprep.mubr.f32.mxu0 0.0
    %1062 = vmatmul.mubr.f32.gmra.mrb[0].mxu0 %v800
    %v1063 = vpop.f32.mrb[0].mxu0
    %v1064 = vadd.f32 %v787, %v1063
    %v1065 = vpop.f32.mrb[0].mxu0
    %1066 = vmatprep.mubr.f32.mxu0 0.0
    %1067 = vmatmul.mubr.f32.gmra.mrb[0].mxu0 %v803
    %v1068 = vpop.f32.mrb[0].mxu0
    %v1069 = vadd.f32 %v787, %v1068
    %v1070 = vpop.f32.mrb[0].mxu0
    %1071 = vmatprep.mubr.f32.mxu0 0.0
    %1072 = vmatmul.mubr.f32.gmra.mrb[0].mxu0 %v806
    %v1073 = vpop.f32.mrb[0].mxu0
    %v1074 = vadd.f32 %v787, %v1073
    %v1075 = vpop.f32.mrb[0].mxu0
    %1076 = vmatprep.mubr.f32.mxu0 0.0
    %1077 = vmatmul.mubr.f32.gmra.mrb[0].mxu0 %v809
    %v1078 = vpop.f32.mrb[0].mxu0
    %v1079 = vadd.f32 %v787, %v1078
    %v1080 = vpop.f32.mrb[0].mxu0
    %1081 = vmatprep.mubr.f32.mxu0 0.0
    %1082 = vmatmul.mubr.f32.gmra.mrb[0].mxu0 %v812
    %v1083 = vpop.f32.mrb[0].mxu0
    %v1084 = vadd.f32 %v787, %v1083
    %v1085 = vpop.f32.mrb[0].mxu0
    %1086 = vmatprep.mubr.f32.mxu0 0.0
    %1087 = vmatmul.mubr.f32.gmra.mrb[0].mxu0 %v815
    %v1088 = vpop.f32.mrb[0].mxu0
    %v1089 = vadd.f32 %v787, %v1088
    %v1090 = vpop.f32.mrb[0].mxu0
    %1091 = vmatprep.mubr.f32.mxu0 0.0
    %1092 = vmatmul.mubr.f32.gmra.mrb[0].mxu0 %v818
    %v1093 = vpop.f32.mrb[0].mxu0
    %v1094 = vadd.f32 %v787, %v1093
    %v1095 = vpop.f32.mrb[0].mxu0
    %1096 = vmatprep.mubr.f32.mxu0 0.0
    %1097 = vmatmul.mubr.f32.gmra.mrb[0].mxu0 %v821
    %v1098 = vpop.f32.mrb[0].mxu0
    %v1099 = vadd.f32 %v787, %v1098
    %v1100 = vpop.f32.mrb[0].mxu0
    %1101 = vmatprep.mubr.f32.mxu0 0.0
    %1102 = vmatmul.mubr.f32.gmra.mrb[0].mxu0 %v824
    %v1103 = vpop.f32.mrb[0].mxu0
    %v1104 = vadd.f32 %v787, %v1103
    %v1105 = vpop.f32.mrb[0].mxu0
    %1106 = vmatprep.mubr.f32.mxu0 0.0
    %1107 = vmatmul.mubr.f32.gmra.mrb[0].mxu0 %v827
    %v1108 = vpop.f32.mrb[0].mxu0
    %v1109 = vadd.f32 %v787, %v1108
    %v1110 = vpop.f32.mrb[0].mxu0
    %1111 = vmatprep.mubr.f32.mxu0 0.0
    %1112 = vmatmul.mubr.f32.gmra.mrb[0].mxu0 %v830
    %v1113 = vpop.f32.mrb[0].mxu0
    %v1114 = vadd.f32 %v787, %v1113
    %v1115 = vpop.f32.mrb[0].mxu0
    %1116 = vmatprep.mubr.f32.mxu0 0.0
    %1117 = vmatmul.mubr.f32.gmra.mrb[0].mxu0 %v833
    %v1118 = vpop.f32.mrb[0].mxu0
    %v1119 = vadd.f32 %v787, %v1118
    %v1120 = vpop.f32.mrb[0].mxu0
    %1121 = vmatprep.mubr.f32.mxu0 0.0
    %1122 = vmatmul.mubr.f32.gmra.mrb[0].mxu0 %v836
    %v1123 = vpop.f32.mrb[0].mxu0
    %v1124 = vadd.f32 %v787, %v1123
    %v1125 = vpop.f32.mrb[0].mxu0
    %1126 = vmatprep.mubr.f32.mxu0 0.0
    %1127 = vmatmul.mubr.f32.gmra.mrb[0].mxu0 %v839
    %v1128 = vpop.f32.mrb[0].mxu0
    %v1129 = vadd.f32 %v787, %v1128
    %v1130 = vpop.f32.mrb[0].mxu0
    %1131 = vmatprep.mubr.f32.mxu0 0.0
    %1132 = vmatmul.mubr.f32.gmra.mrb[0].mxu0 %v842
    %v1133 = vpop.f32.mrb[0].mxu0
    %v1134 = vadd.f32 %v787, %v1133
    %v1135 = vpop.f32.mrb[0].mxu0
    %1136 = vmatprep.mubr.f32.mxu0 0.0
    %1137 = vmatmul.mubr.f32.gmra.mrb[0].mxu0 %v845
    %v1138 = vpop.f32.mrb[0].mxu0
    %v1139 = vadd.f32 %v787, %v1138
    %v1140 = vpop.f32.mrb[0].mxu0
    %1141 = vmatprep.mubr.f32.mxu0 0.0
    %1142 = vmatmul.mubr.f32.gmra.mrb[0].mxu0 %v848
    %v1143 = vpop.f32.mrb[0].mxu0
    %v1144 = vadd.f32 %v787, %v1143
    %v1145 = vpop.f32.mrb[0].mxu0
    %1146 = vmatprep.mubr.f32.mxu0 0.0
    %1147 = vmatmul.mubr.f32.gmra.mrb[0].mxu0 %v851
    %v1148 = vpop.f32.mrb[0].mxu0
    %v1149 = vadd.f32 %v787, %v1148
    %v1150 = vpop.f32.mrb[0].mxu0
    %1151 = vmatprep.mubr.f32.mxu0 0.0
    %1152 = vmatmul.mubr.f32.gmra.mrb[0].mxu0 %v854
    %v1153 = vpop.f32.mrb[0].mxu0
    %v1154 = vadd.f32 %v787, %v1153
    %v1155 = vpop.f32.mrb[0].mxu0
    %1156 = vmatprep.mubr.f32.mxu0 0.0
    %1157 = vmatmul.mubr.f32.gmra.mrb[0].mxu0 %v857
    %v1158 = vpop.f32.mrb[0].mxu0
    %v1159 = vadd.f32 %v787, %v1158
    %v1160 = vpop.f32.mrb[0].mxu0
    %1161 = vmatprep.mubr.f32.mxu0 0.0
    %1162 = vmatmul.mubr.f32.gmra.mrb[0].mxu0 %v860
    %v1163 = vpop.f32.mrb[0].mxu0
    %v1164 = vadd.f32 %v787, %v1163
    %v1165 = vpop.f32.mrb[0].mxu0
    %1166 = vmatprep.mubr.f32.mxu0 0.0
    %1167 = vmatmul.mubr.f32.gmra.mrb[0].mxu0 %v863
    %v1168 = vpop.f32.mrb[0].mxu0
    %v1169 = vadd.f32 %v787, %v1168
    %v1170 = vpop.f32.mrb[0].mxu0
    %1171 = vmatprep.mubr.f32.mxu0 0.0
    %1172 = vmatmul.mubr.f32.gmra.mrb[0].mxu0 %v866
    %v1173 = vpop.f32.mrb[0].mxu0
    %v1174 = vadd.f32 %v787, %v1173
    %v1175 = vpop.f32.mrb[0].mxu0
    %1176 = vmatprep.mubr.f32.mxu0 0.0
    %1177 = vmatmul.mubr.f32.gmra.mrb[0].mxu0 %v869
    %v1178 = vpop.f32.mrb[0].mxu0
    %v1179 = vadd.f32 %v787, %v1178
    %v1180 = vpop.f32.mrb[0].mxu0
    %1181 = vmatprep.mubr.f32.mxu0 0.0
    %1182 = vmatmul.mubr.f32.gmra.mrb[0].mxu0 %v872
    %v1183 = vpop.f32.mrb[0].mxu0
    %v1184 = vadd.f32 %v787, %v1183
    %v1185 = vpop.f32.mrb[0].mxu0
    %1186 = vmatprep.mubr.f32.mxu0 0.0
    %1187 = vmatmul.mubr.f32.gmra.mrb[0].mxu0 %v875
    %v1188 = vpop.f32.mrb[0].mxu0
    %v1189 = vadd.f32 %v787, %v1188
    %v1190 = vpop.f32.mrb[0].mxu0
    %1191 = vmatprep.mubr.f32.mxu0 0.0
    %1192 = vmatmul.mubr.f32.gmra.mrb[0].mxu0 %v878
    %v1193 = vpop.f32.mrb[0].mxu0
    %v1194 = vadd.f32 %v787, %v1193
    %v1195 = vpop.f32.mrb[0].mxu0
    %1196 = vmatprep.mubr.f32.mxu0 0.0
    %1197 = vmatmul.mubr.f32.gmra.mrb[0].mxu0 %v881
    %v1198 = vpop.f32.mrb[0].mxu0
    %v1199 = vadd.f32 %v787, %v1198
    %v1200 = vpop.f32.mrb[0].mxu0
    %1201 = vmatprep.mubr.f32.mxu0 0.0
    %1202 = vmatmul.mubr.f32.gmra.mrb[0].mxu0 %v884
    %v1203 = vpop.f32.mrb[0].mxu0
    %v1204 = vadd.f32 %v787, %v1203
    %v1205 = vpop.f32.mrb[0].mxu0
    %1206 = vmatprep.mubr.f32.mxu0 0.0
    %1207 = vmatmul.mubr.f32.gmra.mrb[0].mxu0 %v887
    %v1208 = vpop.f32.mrb[0].mxu0
    %v1209 = vadd.f32 %v787, %v1208
    %v1210 = vpop.f32.mrb[0].mxu0
    %1211 = vmatprep.mubr.f32.mxu0 0.0
    %1212 = vmatmul.mubr.f32.gmra.mrb[0].mxu0 %v890
    %v1213 = vpop.f32.mrb[0].mxu0
    %v1214 = vadd.f32 %v787, %v1213
    %v1215 = vpop.f32.mrb[0].mxu0
    %1216 = vmatprep.mubr.f32.mxu0 0.0
    %1217 = vmatmul.mubr.f32.gmra.mrb[0].mxu0 %v893
    %v1218 = vpop.f32.mrb[0].mxu0
    %v1219 = vadd.f32 %v787, %v1218
    %v1220 = vpop.f32.mrb[0].mxu0
    %1221 = vmatprep.mubr.f32.mxu0 0.0
    %1222 = vmatmul.mubr.f32.gmra.mrb[0].mxu0 %v896
    %v1223 = vpop.f32.mrb[0].mxu0
    %v1224 = vadd.f32 %v787, %v1223
    %v1225 = vpop.f32.mrb[0].mxu0
    %1226 = vmatprep.mubr.f32.mxu0 0.0
    %1227 = vmatmul.mubr.f32.gmra.mrb[0].mxu0 %v899
    %v1228 = vpop.f32.mrb[0].mxu0
    %v1229 = vadd.f32 %v787, %v1228
    %v1230 = vpop.f32.mrb[0].mxu0
    %1231 = vmatprep.mubr.f32.mxu0 0.0
    %1232 = vmatmul.mubr.f32.gmra.mrb[0].mxu0 %v902
    %v1233 = vpop.f32.mrb[0].mxu0
    %v1234 = vadd.f32 %v787, %v1233
    %v1235 = vpop.f32.mrb[0].mxu0
    %1236 = vmatprep.mubr.f32.mxu0 0.0
    %1237 = vmatmul.mubr.f32.gmra.mrb[0].mxu0 %v905
    %v1238 = vpop.f32.mrb[0].mxu0
    %v1239 = vadd.f32 %v787, %v1238
    %v1240 = vpop.f32.mrb[0].mxu0
    %1241 = vmatprep.mubr.f32.mxu0 0.0
    %1242 = vmatmul.mubr.f32.gmra.mrb[0].mxu0 %v908
    %v1243 = vpop.f32.mrb[0].mxu0
    %v1244 = vadd.f32 %v787, %v1243
    %v1245 = vpop.f32.mrb[0].mxu0
    %1246 = vmatprep.mubr.f32.mxu0 0.0
    %1247 = vmatmul.mubr.f32.gmra.mrb[0].mxu0 %v911
    %v1248 = vpop.f32.mrb[0].mxu0
    %v1249 = vadd.f32 %v787, %v1248
    %v1250 = vpop.f32.mrb[0].mxu0
    %1251 = vmatprep.mubr.f32.mxu0 0.0
    %1252 = vmatmul.mubr.f32.gmra.mrb[0].mxu0 %v914
    %v1253 = vpop.f32.mrb[0].mxu0
    %v1254 = vadd.f32 %v787, %v1253
    %v1255 = vpop.f32.mrb[0].mxu0
    %1256 = vmatprep.mubr.f32.mxu0 0.0
    %1257 = vmatmul.mubr.f32.gmra.mrb[0].mxu0 %v917
    %v1258 = vpop.f32.mrb[0].mxu0
    %v1259 = vadd.f32 %v787, %v1258
    %v1260 = vpop.f32.mrb[0].mxu0
    %1261 = vmatprep.mubr.f32.mxu0 0.0
    %1262 = vmatmul.mubr.f32.gmra.mrb[0].mxu0 %v920
    %v1263 = vpop.f32.mrb[0].mxu0
    %v1264 = vadd.f32 %v787, %v1263
    %v1265 = vpop.f32.mrb[0].mxu0
    %1266 = vmatprep.mubr.f32.mxu0 0.0
    %1267 = vmatmul.mubr.f32.gmra.mrb[0].mxu0 %v923
    %v1268 = vpop.f32.mrb[0].mxu0
    %v1269 = vadd.f32 %v787, %v1268
    %v1270 = vpop.f32.mrb[0].mxu0
    %1271 = vmatprep.mubr.f32.mxu0 0.0
    %1272 = vmatmul.mubr.f32.gmra.mrb[0].mxu0 %v926
    %v1273 = vpop.f32.mrb[0].mxu0
    %v1274 = vadd.f32 %v787, %v1273
    %v1275 = vpop.f32.mrb[0].mxu0
    %1276 = vmatprep.mubr.f32.mxu0 0.0
    %1277 = vmatmul.mubr.f32.gmra.mrb[0].mxu0 %v929
    %v1278 = vpop.f32.mrb[0].mxu0
    %v1279 = vadd.f32 %v787, %v1278
    %v1280 = vpop.f32.mrb[0].mxu0
    %1281 = vmatprep.mubr.f32.mxu0 0.0
    %1282 = vmatmul.mubr.f32.gmra.mrb[0].mxu0 %v932
    %v1283 = vpop.f32.mrb[0].mxu0
    %v1284 = vadd.f32 %v787, %v1283
    %v1285 = vpop.f32.mrb[0].mxu0
    %1286 = vmatprep.mubr.f32.mxu0 0.0
    %1287 = vmatmul.mubr.f32.gmra.mrb[0].mxu0 %v935
    %v1288 = vpop.f32.mrb[0].mxu0
    %v1289 = vadd.f32 %v787, %v1288
    %v1290 = vpop.f32.mrb[0].mxu0
    %1291 = vmatprep.mubr.f32.mxu0 0.0
    %1292 = vmatmul.mubr.f32.gmra.mrb[0].mxu0 %v938
    %v1293 = vpop.f32.mrb[0].mxu0
    %v1294 = vadd.f32 %v787, %v1293
    %v1295 = vpop.f32.mrb[0].mxu0
    %1296 = vmatprep.mubr.f32.mxu0 0.0
    %1297 = vmatmul.mubr.f32.gmra.mrb[0].mxu0 %v941
    %v1298 = vpop.f32.mrb[0].mxu0
    %v1299 = vadd.f32 %v787, %v1298
    %v1300 = vpop.f32.mrb[0].mxu0
    %1301 = vmatprep.mubr.f32.mxu0 0.0
    %1302 = vmatmul.mubr.f32.gmra.mrb[0].mxu0 %v944
    %v1303 = vpop.f32.mrb[0].mxu0
    %v1304 = vadd.f32 %v787, %v1303
    %v1305 = vpop.f32.mrb[0].mxu0
    %1306 = vmatprep.mubr.f32.mxu0 0.0
    %1307 = vmatmul.mubr.f32.gmra.mrb[0].mxu0 %v947
    %v1308 = vpop.f32.mrb[0].mxu0
    %v1309 = vadd.f32 %v787, %v1308
    %v1310 = vpop.f32.mrb[0].mxu0
    %1311 = vmatprep.mubr.f32.mxu0 0.0
    %1312 = vmatmul.mubr.f32.gmra.mrb[0].mxu0 %v950
    %v1313 = vpop.f32.mrb[0].mxu0
    %v1314 = vadd.f32 %v787, %v1313
    %v1315 = vpop.f32.mrb[0].mxu0
    %1316 = vmatprep.mubr.f32.mxu0 0.0
    %1317 = vmatmul.mubr.f32.gmra.mrb[0].mxu0 %v953
    %v1318 = vpop.f32.mrb[0].mxu0
    %v1319 = vadd.f32 %v787, %v1318
    %v1320 = vpop.f32.mrb[0].mxu0
    %1321 = vmatprep.mubr.f32.mxu0 0.0
    %1322 = vmatmul.mubr.f32.gmra.mrb[0].mxu0 %v956
    %v1323 = vpop.f32.mrb[0].mxu0
    %v1324 = vadd.f32 %v787, %v1323
    %v1325 = vpop.f32.mrb[0].mxu0
    %1326 = vmatprep.mubr.f32.mxu0 0.0
    %1327 = vmatmul.mubr.f32.gmra.mrb[0].mxu0 %v959
    %v1328 = vpop.f32.mrb[0].mxu0
    %v1329 = vadd.f32 %v787, %v1328
    %v1330 = vpop.f32.mrb[0].mxu0
    %1331 = vmatprep.mubr.f32.mxu0 0.0
    %1332 = vmatmul.mubr.f32.gmra.mrb[0].mxu0 %v962
    %v1333 = vpop.f32.mrb[0].mxu0
    %v1334 = vadd.f32 %v787, %v1333
    %v1335 = vpop.f32.mrb[0].mxu0
    %1336 = vmatprep.mubr.f32.mxu0 0.0
    %1337 = vmatmul.mubr.f32.gmra.mrb[0].mxu0 %v965
    %v1338 = vpop.f32.mrb[0].mxu0
    %v1339 = vadd.f32 %v787, %v1338
    %v1340 = vpop.f32.mrb[0].mxu0
    %1341 = vmatprep.mubr.f32.mxu0 0.0
    %1342 = vmatmul.mubr.f32.gmra.mrb[0].mxu0 %v968
    %v1343 = vpop.f32.mrb[0].mxu0
    %v1344 = vadd.f32 %v787, %v1343
    %v1345 = vpop.f32.mrb[0].mxu0
    %1346 = vmatprep.mubr.f32.mxu0 0.0
    %1347 = vmatmul.mubr.f32.gmra.mrb[0].mxu0 %v971
    %v1348 = vpop.f32.mrb[0].mxu0
    %v1349 = vadd.f32 %v787, %v1348
    %v1350 = vpop.f32.mrb[0].mxu0
    %1351 = vmatprep.mubr.f32.mxu0 0.0
    %1352 = vmatmul.mubr.f32.gmra.mrb[0].mxu0 %v974
    %v1353 = vpop.f32.mrb[0].mxu0
    %v1354 = vadd.f32 %v787, %v1353
    %v1355 = vpop.f32.mrb[0].mxu0
    %1356 = vmatprep.mubr.f32.mxu0 0.0
    %1357 = vmatmul.mubr.f32.gmra.mrb[0].mxu0 %v977
    %v1358 = vpop.f32.mrb[0].mxu0
    %v1359 = vadd.f32 %v787, %v1358
    %v1360 = vpop.f32.mrb[0].mxu0
    %1361 = vmatprep.mubr.f32.mxu0 0.0
    %1362 = vmatmul.mubr.f32.gmra.mrb[0].mxu0 %v980
    %v1363 = vpop.f32.mrb[0].mxu0
    %v1364 = vadd.f32 %v787, %v1363
    %v1365 = vpop.f32.mrb[0].mxu0
    %1366 = vdwg.mxu0
    %v1367 = vmax.f32 %v1049, 0.0
    %v1368 = vmax.f32 %v1054, 0.0
    %v1369 = vmax.f32 %v1059, 0.0
    %v1370 = vmax.f32 %v1064, 0.0
    %v1371 = vmax.f32 %v1069, 0.0
    %v1372 = vmax.f32 %v1074, 0.0
    %v1373 = vmax.f32 %v1079, 0.0
    %v1374 = vmax.f32 %v1084, 0.0
    %v1375 = vmax.f32 %v1089, 0.0
    %v1376 = vmax.f32 %v1094, 0.0
    %v1377 = vmax.f32 %v1099, 0.0
    %v1378 = vmax.f32 %v1104, 0.0
    %v1379 = vmax.f32 %v1109, 0.0
    %v1380 = vmax.f32 %v1114, 0.0
    %v1381 = vmax.f32 %v1119, 0.0
    %v1382 = vmax.f32 %v1124, 0.0
    %v1383 = vmax.f32 %v1129, 0.0
    %v1384 = vmax.f32 %v1134, 0.0
    %v1385 = vmax.f32 %v1139, 0.0
    %v1386 = vmax.f32 %v1144, 0.0
    %v1387 = vmax.f32 %v1149, 0.0
    %v1388 = vmax.f32 %v1154, 0.0
    %v1389 = vmax.f32 %v1159, 0.0
    %v1390 = vmax.f32 %v1164, 0.0
    %v1391 = vmax.f32 %v1169, 0.0
    %v1392 = vmax.f32 %v1174, 0.0
    %v1393 = vmax.f32 %v1179, 0.0
    %v1394 = vmax.f32 %v1184, 0.0
    %v1395 = vmax.f32 %v1189, 0.0
    %v1396 = vmax.f32 %v1194, 0.0
    %v1397 = vmax.f32 %v1199, 0.0
    %v1398 = vmax.f32 %v1204, 0.0
    %v1399 = vmax.f32 %v1209, 0.0
    %v1400 = vmax.f32 %v1214, 0.0
    %v1401 = vmax.f32 %v1219, 0.0
    %v1402 = vmax.f32 %v1224, 0.0
    %v1403 = vmax.f32 %v1229, 0.0
    %v1404 = vmax.f32 %v1234, 0.0
    %v1405 = vmax.f32 %v1239, 0.0
    %v1406 = vmax.f32 %v1244, 0.0
    %v1407 = vmax.f32 %v1249, 0.0
    %v1408 = vmax.f32 %v1254, 0.0
    %v1409 = vmax.f32 %v1259, 0.0
    %v1410 = vmax.f32 %v1264, 0.0
    %v1411 = vmax.f32 %v1269, 0.0
    %v1412 = vmax.f32 %v1274, 0.0
    %v1413 = vmax.f32 %v1279, 0.0
    %v1414 = vmax.f32 %v1284, 0.0
    %v1415 = vmax.f32 %v1289, 0.0
    %v1416 = vmax.f32 %v1294, 0.0
    %v1417 = vmax.f32 %v1299, 0.0
    %v1418 = vmax.f32 %v1304, 0.0
    %v1419 = vmax.f32 %v1309, 0.0
    %v1420 = vmax.f32 %v1314, 0.0
    %v1421 = vmax.f32 %v1319, 0.0
    %v1422 = vmax.f32 %v1324, 0.0
    %v1423 = vmax.f32 %v1329, 0.0
    %v1424 = vmax.f32 %v1334, 0.0
    %v1425 = vmax.f32 %v1339, 0.0
    %v1426 = vmax.f32 %v1344, 0.0
    %v1427 = vmax.f32 %v1349, 0.0
    %v1428 = vmax.f32 %v1354, 0.0
    %v1429 = vmax.f32 %v1359, 0.0
    %v1430 = vmax.f32 %v1364, 0.0
    %v1431 = vld [vmem:[%s5] sm:$0x1]
    %v1433 = vlaneseq
    %v1434 = vshrl.u32 %v1433, 7
    %v1435 = vsub.s32 0, %v1434
    %v1436 = vrot.slane %v1431, %v1435
    %v1438 = vmul.f32 %v1367, %v1436
    %v1439 = vmul.f32 %v1368, %v1436
    %v1440 = vmul.f32 %v1369, %v1436
    %v1441 = vmul.f32 %v1370, %v1436
    %v1442 = vmul.f32 %v1371, %v1436
    %v1443 = vmul.f32 %v1372, %v1436
    %v1444 = vmul.f32 %v1373, %v1436
    %v1445 = vmul.f32 %v1374, %v1436
    %v1446 = vmul.f32 %v1375, %v1436
    %v1447 = vmul.f32 %v1376, %v1436
    %v1448 = vmul.f32 %v1377, %v1436
    %v1449 = vmul.f32 %v1378, %v1436
    %v1450 = vmul.f32 %v1379, %v1436
    %v1451 = vmul.f32 %v1380, %v1436
    %v1452 = vmul.f32 %v1381, %v1436
    %v1453 = vmul.f32 %v1382, %v1436
    %v1454 = vmul.f32 %v1383, %v1436
    %v1455 = vmul.f32 %v1384, %v1436
    %v1456 = vmul.f32 %v1385, %v1436
    %v1457 = vmul.f32 %v1386, %v1436
    %v1458 = vmul.f32 %v1387, %v1436
    %v1459 = vmul.f32 %v1388, %v1436
    %v1460 = vmul.f32 %v1389, %v1436
    %v1461 = vmul.f32 %v1390, %v1436
    %v1462 = vmul.f32 %v1391, %v1436
    %v1463 = vmul.f32 %v1392, %v1436
    %v1464 = vmul.f32 %v1393, %v1436
    %v1465 = vmul.f32 %v1394, %v1436
    %v1466 = vmul.f32 %v1395, %v1436
    %v1467 = vmul.f32 %v1396, %v1436
    %v1468 = vmul.f32 %v1397, %v1436
    %v1469 = vmul.f32 %v1398, %v1436
    %v1470 = vmul.f32 %v1399, %v1436
    %v1471 = vmul.f32 %v1400, %v1436
    %v1472 = vmul.f32 %v1401, %v1436
    %v1473 = vmul.f32 %v1402, %v1436
    %v1474 = vmul.f32 %v1403, %v1436
    %v1475 = vmul.f32 %v1404, %v1436
    %v1476 = vmul.f32 %v1405, %v1436
    %v1477 = vmul.f32 %v1406, %v1436
    %v1478 = vmul.f32 %v1407, %v1436
    %v1479 = vmul.f32 %v1408, %v1436
    %v1480 = vmul.f32 %v1409, %v1436
    %v1481 = vmul.f32 %v1410, %v1436
    %v1482 = vmul.f32 %v1411, %v1436
    %v1483 = vmul.f32 %v1412, %v1436
    %v1484 = vmul.f32 %v1413, %v1436
    %v1485 = vmul.f32 %v1414, %v1436
    %v1486 = vmul.f32 %v1415, %v1436
    %v1487 = vmul.f32 %v1416, %v1436
    %v1488 = vmul.f32 %v1417, %v1436
    %v1489 = vmul.f32 %v1418, %v1436
    %v1490 = vmul.f32 %v1419, %v1436
    %v1491 = vmul.f32 %v1420, %v1436
    %v1492 = vmul.f32 %v1421, %v1436
    %v1493 = vmul.f32 %v1422, %v1436
    %v1494 = vmul.f32 %v1423, %v1436
    %v1495 = vmul.f32 %v1424, %v1436
    %v1496 = vmul.f32 %v1425, %v1436
    %v1497 = vmul.f32 %v1426, %v1436
    %v1498 = vmul.f32 %v1427, %v1436
    %v1499 = vmul.f32 %v1428, %v1436
    %v1500 = vmul.f32 %v1429, %v1436
    %v1501 = vmul.f32 %v1430, %v1436
    %vm1502 = vcmask 261120
    %v1503 = vsel %vm1502, %v1438, 0.0
    %1504 = vadd.xlane.f32.xlu0 %v1503
    %v1505 = vpop.xlane.xlu0 %1504
    %v1506 = vsel %vm1502, %v1439, 0.0
    %1507 = vadd.xlane.f32.xlu0 %v1506
    %v1508 = vpop.xlane.xlu0 %1507
    %v1509 = vsel %vm1502, %v1440, 0.0
    %1510 = vadd.xlane.f32.xlu0 %v1509
    %v1511 = vpop.xlane.xlu0 %1510
    %v1512 = vsel %vm1502, %v1441, 0.0
    %1513 = vadd.xlane.f32.xlu0 %v1512
    %v1514 = vpop.xlane.xlu0 %1513
    %v1515 = vsel %vm1502, %v1442, 0.0
    %1516 = vadd.xlane.f32.xlu0 %v1515
    %v1517 = vpop.xlane.xlu0 %1516
    %v1518 = vsel %vm1502, %v1443, 0.0
    %1519 = vadd.xlane.f32.xlu0 %v1518
    %v1520 = vpop.xlane.xlu0 %1519
    %v1521 = vsel %vm1502, %v1444, 0.0
    %1522 = vadd.xlane.f32.xlu0 %v1521
    %v1523 = vpop.xlane.xlu0 %1522
    %v1524 = vsel %vm1502, %v1445, 0.0
    %1525 = vadd.xlane.f32.xlu0 %v1524
    %v1526 = vpop.xlane.xlu0 %1525
    %v1527 = vsel %vm1502, %v1446, 0.0
    %1528 = vadd.xlane.f32.xlu0 %v1527
    %v1529 = vpop.xlane.xlu0 %1528
    %v1530 = vsel %vm1502, %v1447, 0.0
    %1531 = vadd.xlane.f32.xlu0 %v1530
    %v1532 = vpop.xlane.xlu0 %1531
    %v1533 = vsel %vm1502, %v1448, 0.0
    %1534 = vadd.xlane.f32.xlu0 %v1533
    %v1535 = vpop.xlane.xlu0 %1534
    %v1536 = vsel %vm1502, %v1449, 0.0
    %1537 = vadd.xlane.f32.xlu0 %v1536
    %v1538 = vpop.xlane.xlu0 %1537
    %v1539 = vsel %vm1502, %v1450, 0.0
    %1540 = vadd.xlane.f32.xlu0 %v1539
    %v1541 = vpop.xlane.xlu0 %1540
    %v1542 = vsel %vm1502, %v1451, 0.0
    %1543 = vadd.xlane.f32.xlu0 %v1542
    %v1544 = vpop.xlane.xlu0 %1543
    %v1545 = vsel %vm1502, %v1452, 0.0
    %1546 = vadd.xlane.f32.xlu0 %v1545
    %v1547 = vpop.xlane.xlu0 %1546
    %v1548 = vsel %vm1502, %v1453, 0.0
    %1549 = vadd.xlane.f32.xlu0 %v1548
    %v1550 = vpop.xlane.xlu0 %1549
    %v1551 = vsel %vm1502, %v1454, 0.0
    %1552 = vadd.xlane.f32.xlu0 %v1551
    %v1553 = vpop.xlane.xlu0 %1552
    %v1554 = vsel %vm1502, %v1455, 0.0
    %1555 = vadd.xlane.f32.xlu0 %v1554
    %v1556 = vpop.xlane.xlu0 %1555
    %v1557 = vsel %vm1502, %v1456, 0.0
    %1558 = vadd.xlane.f32.xlu0 %v1557
    %v1559 = vpop.xlane.xlu0 %1558
    %v1560 = vsel %vm1502, %v1457, 0.0
    %1561 = vadd.xlane.f32.xlu0 %v1560
    %v1562 = vpop.xlane.xlu0 %1561
    %v1563 = vsel %vm1502, %v1458, 0.0
    %1564 = vadd.xlane.f32.xlu0 %v1563
    %v1565 = vpop.xlane.xlu0 %1564
    %v1566 = vsel %vm1502, %v1459, 0.0
    %1567 = vadd.xlane.f32.xlu0 %v1566
    %v1568 = vpop.xlane.xlu0 %1567
    %v1569 = vsel %vm1502, %v1460, 0.0
    %1570 = vadd.xlane.f32.xlu0 %v1569
    %v1571 = vpop.xlane.xlu0 %1570
    %v1572 = vsel %vm1502, %v1461, 0.0
    %1573 = vadd.xlane.f32.xlu0 %v1572
    %v1574 = vpop.xlane.xlu0 %1573
    %v1575 = vsel %vm1502, %v1462, 0.0
    %1576 = vadd.xlane.f32.xlu0 %v1575
    %v1577 = vpop.xlane.xlu0 %1576
    %v1578 = vsel %vm1502, %v1463, 0.0
    %1579 = vadd.xlane.f32.xlu0 %v1578
    %v1580 = vpop.xlane.xlu0 %1579
    %v1581 = vsel %vm1502, %v1464, 0.0
    %1582 = vadd.xlane.f32.xlu0 %v1581
    %v1583 = vpop.xlane.xlu0 %1582
    %v1584 = vsel %vm1502, %v1465, 0.0
    %1585 = vadd.xlane.f32.xlu0 %v1584
    %v1586 = vpop.xlane.xlu0 %1585
    %v1587 = vsel %vm1502, %v1466, 0.0
    %1588 = vadd.xlane.f32.xlu0 %v1587
    %v1589 = vpop.xlane.xlu0 %1588
    %v1590 = vsel %vm1502, %v1467, 0.0
    %1591 = vadd.xlane.f32.xlu0 %v1590
    %v1592 = vpop.xlane.xlu0 %1591
    %v1593 = vsel %vm1502, %v1468, 0.0
    %1594 = vadd.xlane.f32.xlu0 %v1593
    %v1595 = vpop.xlane.xlu0 %1594
    %v1596 = vsel %vm1502, %v1469, 0.0
    %1597 = vadd.xlane.f32.xlu0 %v1596
    %v1598 = vpop.xlane.xlu0 %1597
    %v1599 = vsel %vm1502, %v1470, 0.0
    %1600 = vadd.xlane.f32.xlu0 %v1599
    %v1601 = vpop.xlane.xlu0 %1600
    %v1602 = vsel %vm1502, %v1471, 0.0
    %1603 = vadd.xlane.f32.xlu0 %v1602
    %v1604 = vpop.xlane.xlu0 %1603
    %v1605 = vsel %vm1502, %v1472, 0.0
    %1606 = vadd.xlane.f32.xlu0 %v1605
    %v1607 = vpop.xlane.xlu0 %1606
    %v1608 = vsel %vm1502, %v1473, 0.0
    %1609 = vadd.xlane.f32.xlu0 %v1608
    %v1610 = vpop.xlane.xlu0 %1609
    %v1611 = vsel %vm1502, %v1474, 0.0
    %1612 = vadd.xlane.f32.xlu0 %v1611
    %v1613 = vpop.xlane.xlu0 %1612
    %v1614 = vsel %vm1502, %v1475, 0.0
    %1615 = vadd.xlane.f32.xlu0 %v1614
    %v1616 = vpop.xlane.xlu0 %1615
    %v1617 = vsel %vm1502, %v1476, 0.0
    %1618 = vadd.xlane.f32.xlu0 %v1617
    %v1619 = vpop.xlane.xlu0 %1618
    %v1620 = vsel %vm1502, %v1477, 0.0
    %1621 = vadd.xlane.f32.xlu0 %v1620
    %v1622 = vpop.xlane.xlu0 %1621
    %v1623 = vsel %vm1502, %v1478, 0.0
    %1624 = vadd.xlane.f32.xlu0 %v1623
    %v1625 = vpop.xlane.xlu0 %1624
    %v1626 = vsel %vm1502, %v1479, 0.0
    %1627 = vadd.xlane.f32.xlu0 %v1626
    %v1628 = vpop.xlane.xlu0 %1627
    %v1629 = vsel %vm1502, %v1480, 0.0
    %1630 = vadd.xlane.f32.xlu0 %v1629
    %v1631 = vpop.xlane.xlu0 %1630
    %v1632 = vsel %vm1502, %v1481, 0.0
    %1633 = vadd.xlane.f32.xlu0 %v1632
    %v1634 = vpop.xlane.xlu0 %1633
    %v1635 = vsel %vm1502, %v1482, 0.0
    %1636 = vadd.xlane.f32.xlu0 %v1635
    %v1637 = vpop.xlane.xlu0 %1636
    %v1638 = vsel %vm1502, %v1483, 0.0
    %1639 = vadd.xlane.f32.xlu0 %v1638
    %v1640 = vpop.xlane.xlu0 %1639
    %v1641 = vsel %vm1502, %v1484, 0.0
    %1642 = vadd.xlane.f32.xlu0 %v1641
    %v1643 = vpop.xlane.xlu0 %1642
    %v1644 = vsel %vm1502, %v1485, 0.0
    %1645 = vadd.xlane.f32.xlu0 %v1644
    %v1646 = vpop.xlane.xlu0 %1645
    %v1647 = vsel %vm1502, %v1486, 0.0
    %1648 = vadd.xlane.f32.xlu0 %v1647
    %v1649 = vpop.xlane.xlu0 %1648
    %v1650 = vsel %vm1502, %v1487, 0.0
    %1651 = vadd.xlane.f32.xlu0 %v1650
    %v1652 = vpop.xlane.xlu0 %1651
    %v1653 = vsel %vm1502, %v1488, 0.0
    %1654 = vadd.xlane.f32.xlu0 %v1653
    %v1655 = vpop.xlane.xlu0 %1654
    %v1656 = vsel %vm1502, %v1489, 0.0
    %1657 = vadd.xlane.f32.xlu0 %v1656
    %v1658 = vpop.xlane.xlu0 %1657
    %v1659 = vsel %vm1502, %v1490, 0.0
    %1660 = vadd.xlane.f32.xlu0 %v1659
    %v1661 = vpop.xlane.xlu0 %1660
    %v1662 = vsel %vm1502, %v1491, 0.0
    %1663 = vadd.xlane.f32.xlu0 %v1662
    %v1664 = vpop.xlane.xlu0 %1663
    %v1665 = vsel %vm1502, %v1492, 0.0
    %1666 = vadd.xlane.f32.xlu0 %v1665
    %v1667 = vpop.xlane.xlu0 %1666
    %v1668 = vsel %vm1502, %v1493, 0.0
    %1669 = vadd.xlane.f32.xlu0 %v1668
    %v1670 = vpop.xlane.xlu0 %1669
    %v1671 = vsel %vm1502, %v1494, 0.0
    %1672 = vadd.xlane.f32.xlu0 %v1671
    %v1673 = vpop.xlane.xlu0 %1672
    %v1674 = vsel %vm1502, %v1495, 0.0
    %1675 = vadd.xlane.f32.xlu0 %v1674
    %v1676 = vpop.xlane.xlu0 %1675
    %v1677 = vsel %vm1502, %v1496, 0.0
    %1678 = vadd.xlane.f32.xlu0 %v1677
    %v1679 = vpop.xlane.xlu0 %1678
    %v1680 = vsel %vm1502, %v1497, 0.0
    %1681 = vadd.xlane.f32.xlu0 %v1680
    %v1682 = vpop.xlane.xlu0 %1681
    %v1683 = vsel %vm1502, %v1498, 0.0
    %1684 = vadd.xlane.f32.xlu0 %v1683
    %v1685 = vpop.xlane.xlu0 %1684
    %v1686 = vsel %vm1502, %v1499, 0.0
    %1687 = vadd.xlane.f32.xlu0 %v1686
    %v1688 = vpop.xlane.xlu0 %1687
    %v1689 = vsel %vm1502, %v1500, 0.0
    %1690 = vadd.xlane.f32.xlu0 %v1689
    %v1691 = vpop.xlane.xlu0 %1690
    %v1692 = vsel %vm1502, %v1501, 0.0
    %1693 = vadd.xlane.f32.xlu0 %v1692
    %v1694 = vpop.xlane.xlu0 %1693
    %v1695 = vld [vmem:[#allocation2] sm:$0x1]
    %v1697 = vlaneseq
    %v1698 = vshrl.u32 %v1697, 7
    %v1699 = vsub.s32 0, %v1698
    %v1700 = vrot.slane %v1695, %v1699
    %1701 = vset.pattern.permute.xlu0 0
    %1702 = vperm.xlu0 %1701, %v1700
    %v1703 = vpop.permute.xlu0 %1702
    %v1705 = vadd.f32 %v1505, %v1703
    %v1706 = vadd.f32 %v1508, %v1703
    %v1707 = vadd.f32 %v1511, %v1703
    %v1708 = vadd.f32 %v1514, %v1703
    %v1709 = vadd.f32 %v1517, %v1703
    %v1710 = vadd.f32 %v1520, %v1703
    %v1711 = vadd.f32 %v1523, %v1703
    %v1712 = vadd.f32 %v1526, %v1703
    %v1713 = vadd.f32 %v1529, %v1703
    %v1714 = vadd.f32 %v1532, %v1703
    %v1715 = vadd.f32 %v1535, %v1703
    %v1716 = vadd.f32 %v1538, %v1703
    %v1717 = vadd.f32 %v1541, %v1703
    %v1718 = vadd.f32 %v1544, %v1703
    %v1719 = vadd.f32 %v1547, %v1703
    %v1720 = vadd.f32 %v1550, %v1703
    %v1721 = vadd.f32 %v1553, %v1703
    %v1722 = vadd.f32 %v1556, %v1703
    %v1723 = vadd.f32 %v1559, %v1703
    %v1724 = vadd.f32 %v1562, %v1703
    %v1725 = vadd.f32 %v1565, %v1703
    %v1726 = vadd.f32 %v1568, %v1703
    %v1727 = vadd.f32 %v1571, %v1703
    %v1728 = vadd.f32 %v1574, %v1703
    %v1729 = vadd.f32 %v1577, %v1703
    %v1730 = vadd.f32 %v1580, %v1703
    %v1731 = vadd.f32 %v1583, %v1703
    %v1732 = vadd.f32 %v1586, %v1703
    %v1733 = vadd.f32 %v1589, %v1703
    %v1734 = vadd.f32 %v1592, %v1703
    %v1735 = vadd.f32 %v1595, %v1703
    %v1736 = vadd.f32 %v1598, %v1703
    %v1737 = vadd.f32 %v1601, %v1703
    %v1738 = vadd.f32 %v1604, %v1703
    %v1739 = vadd.f32 %v1607, %v1703
    %v1740 = vadd.f32 %v1610, %v1703
    %v1741 = vadd.f32 %v1613, %v1703
    %v1742 = vadd.f32 %v1616, %v1703
    %v1743 = vadd.f32 %v1619, %v1703
    %v1744 = vadd.f32 %v1622, %v1703
    %v1745 = vadd.f32 %v1625, %v1703
    %v1746 = vadd.f32 %v1628, %v1703
    %v1747 = vadd.f32 %v1631, %v1703
    %v1748 = vadd.f32 %v1634, %v1703
    %v1749 = vadd.f32 %v1637, %v1703
    %v1750 = vadd.f32 %v1640, %v1703
    %v1751 = vadd.f32 %v1643, %v1703
    %v1752 = vadd.f32 %v1646, %v1703
    %v1753 = vadd.f32 %v1649, %v1703
    %v1754 = vadd.f32 %v1652, %v1703
    %v1755 = vadd.f32 %v1655, %v1703
    %v1756 = vadd.f32 %v1658, %v1703
    %v1757 = vadd.f32 %v1661, %v1703
    %v1758 = vadd.f32 %v1664, %v1703
    %v1759 = vadd.f32 %v1667, %v1703
    %v1760 = vadd.f32 %v1670, %v1703
    %v1761 = vadd.f32 %v1673, %v1703
    %v1762 = vadd.f32 %v1676, %v1703
    %v1763 = vadd.f32 %v1679, %v1703
    %v1764 = vadd.f32 %v1682, %v1703
    %v1765 = vadd.f32 %v1685, %v1703
    %v1766 = vadd.f32 %v1688, %v1703
    %v1767 = vadd.f32 %v1691, %v1703
    %v1768 = vadd.f32 %v1694, %v1703
    %v1833 = vlaneseq
    %v1834 = vand.u32 %v1833, 127
    %v1835 = vlaneseq
    %v1836 = vshrl.u32 %v1835, 7
    %v1837 = vsub.s32 %v1834, %v1836
    %v1838 = vrot.slane %v1705, %v1837
    %v1839 = vadd.s32 %v1834, 4294967288
    %v1840 = vlaneseq
    %v1841 = vshrl.u32 %v1840, 7
    %v1842 = vsub.s32 %v1839, %v1841
    %v1843 = vrot.slane %v1706, %v1842
    %vm1844 = vcmask 130112
    %v1845 = vsel %vm1844, %v1843, %v1838
    %v1846 = vlaneseq
    %v1847 = vshrl.u32 %v1846, 7
    %v1848 = vsub.s32 %v1834, %v1847
    %v1849 = vrot.slane %v1707, %v1848
    %v1850 = vlaneseq
    %v1851 = vshrl.u32 %v1850, 7
    %v1852 = vsub.s32 %v1839, %v1851
    %v1853 = vrot.slane %v1708, %v1852
    %v1854 = vsel %vm1844, %v1853, %v1849
    %v1855 = vlaneseq
    %v1856 = vshrl.u32 %v1855, 7
    %v1857 = vsub.s32 %v1834, %v1856
    %v1858 = vrot.slane %v1709, %v1857
    %v1859 = vlaneseq
    %v1860 = vshrl.u32 %v1859, 7
    %v1861 = vsub.s32 %v1839, %v1860
    %v1862 = vrot.slane %v1710, %v1861
    %v1863 = vsel %vm1844, %v1862, %v1858
    %v1864 = vlaneseq
    %v1865 = vshrl.u32 %v1864, 7
    %v1866 = vsub.s32 %v1834, %v1865
    %v1867 = vrot.slane %v1711, %v1866
    %v1868 = vlaneseq
    %v1869 = vshrl.u32 %v1868, 7
    %v1870 = vsub.s32 %v1839, %v1869
    %v1871 = vrot.slane %v1712, %v1870
    %v1872 = vsel %vm1844, %v1871, %v1867
    %v1873 = vlaneseq
    %v1874 = vshrl.u32 %v1873, 7
    %v1875 = vsub.s32 %v1834, %v1874
    %v1876 = vrot.slane %v1713, %v1875
    %v1877 = vlaneseq
    %v1878 = vshrl.u32 %v1877, 7
    %v1879 = vsub.s32 %v1839, %v1878
    %v1880 = vrot.slane %v1714, %v1879
    %v1881 = vsel %vm1844, %v1880, %v1876
    %v1882 = vlaneseq
    %v1883 = vshrl.u32 %v1882, 7
    %v1884 = vsub.s32 %v1834, %v1883
    %v1885 = vrot.slane %v1715, %v1884
    %v1886 = vlaneseq
    %v1887 = vshrl.u32 %v1886, 7
    %v1888 = vsub.s32 %v1839, %v1887
    %v1889 = vrot.slane %v1716, %v1888
    %v1890 = vsel %vm1844, %v1889, %v1885
    %v1891 = vlaneseq
    %v1892 = vshrl.u32 %v1891, 7
    %v1893 = vsub.s32 %v1834, %v1892
    %v1894 = vrot.slane %v1717, %v1893
    %v1895 = vlaneseq
    %v1896 = vshrl.u32 %v1895, 7
    %v1897 = vsub.s32 %v1839, %v1896
    %v1898 = vrot.slane %v1718, %v1897
    %v1899 = vsel %vm1844, %v1898, %v1894
    %v1900 = vlaneseq
    %v1901 = vshrl.u32 %v1900, 7
    %v1902 = vsub.s32 %v1834, %v1901
    %v1903 = vrot.slane %v1719, %v1902
    %v1904 = vlaneseq
    %v1905 = vshrl.u32 %v1904, 7
    %v1906 = vsub.s32 %v1839, %v1905
    %v1907 = vrot.slane %v1720, %v1906
    %v1908 = vsel %vm1844, %v1907, %v1903
    %v1909 = vlaneseq
    %v1910 = vshrl.u32 %v1909, 7
    %v1911 = vsub.s32 %v1834, %v1910
    %v1912 = vrot.slane %v1721, %v1911
    %v1913 = vlaneseq
    %v1914 = vshrl.u32 %v1913, 7
    %v1915 = vsub.s32 %v1839, %v1914
    %v1916 = vrot.slane %v1722, %v1915
    %v1917 = vsel %vm1844, %v1916, %v1912
    %v1918 = vlaneseq
    %v1919 = vshrl.u32 %v1918, 7
    %v1920 = vsub.s32 %v1834, %v1919
    %v1921 = vrot.slane %v1723, %v1920
    %v1922 = vlaneseq
    %v1923 = vshrl.u32 %v1922, 7
    %v1924 = vsub.s32 %v1839, %v1923
    %v1925 = vrot.slane %v1724, %v1924
    %v1926 = vsel %vm1844, %v1925, %v1921
    %v1927 = vlaneseq
    %v1928 = vshrl.u32 %v1927, 7
    %v1929 = vsub.s32 %v1834, %v1928
    %v1930 = vrot.slane %v1725, %v1929
    %v1931 = vlaneseq
    %v1932 = vshrl.u32 %v1931, 7
    %v1933 = vsub.s32 %v1839, %v1932
    %v1934 = vrot.slane %v1726, %v1933
    %v1935 = vsel %vm1844, %v1934, %v1930
    %v1936 = vlaneseq
    %v1937 = vshrl.u32 %v1936, 7
    %v1938 = vsub.s32 %v1834, %v1937
    %v1939 = vrot.slane %v1727, %v1938
    %v1940 = vlaneseq
    %v1941 = vshrl.u32 %v1940, 7
    %v1942 = vsub.s32 %v1839, %v1941
    %v1943 = vrot.slane %v1728, %v1942
    %v1944 = vsel %vm1844, %v1943, %v1939
    %v1945 = vlaneseq
    %v1946 = vshrl.u32 %v1945, 7
    %v1947 = vsub.s32 %v1834, %v1946
    %v1948 = vrot.slane %v1729, %v1947
    %v1949 = vlaneseq
    %v1950 = vshrl.u32 %v1949, 7
    %v1951 = vsub.s32 %v1839, %v1950
    %v1952 = vrot.slane %v1730, %v1951
    %v1953 = vsel %vm1844, %v1952, %v1948
    %v1954 = vlaneseq
    %v1955 = vshrl.u32 %v1954, 7
    %v1956 = vsub.s32 %v1834, %v1955
    %v1957 = vrot.slane %v1731, %v1956
    %v1958 = vlaneseq
    %v1959 = vshrl.u32 %v1958, 7
    %v1960 = vsub.s32 %v1839, %v1959
    %v1961 = vrot.slane %v1732, %v1960
    %v1962 = vsel %vm1844, %v1961, %v1957
    %v1963 = vlaneseq
    %v1964 = vshrl.u32 %v1963, 7
    %v1965 = vsub.s32 %v1834, %v1964
    %v1966 = vrot.slane %v1733, %v1965
    %v1967 = vlaneseq
    %v1968 = vshrl.u32 %v1967, 7
    %v1969 = vsub.s32 %v1839, %v1968
    %v1970 = vrot.slane %v1734, %v1969
    %v1971 = vsel %vm1844, %v1970, %v1966
    %v1972 = vlaneseq
    %v1973 = vshrl.u32 %v1972, 7
    %v1974 = vsub.s32 %v1834, %v1973
    %v1975 = vrot.slane %v1735, %v1974
    %v1976 = vlaneseq
    %v1977 = vshrl.u32 %v1976, 7
    %v1978 = vsub.s32 %v1839, %v1977
    %v1979 = vrot.slane %v1736, %v1978
    %v1980 = vsel %vm1844, %v1979, %v1975
    %v1981 = vlaneseq
    %v1982 = vshrl.u32 %v1981, 7
    %v1983 = vsub.s32 %v1834, %v1982
    %v1984 = vrot.slane %v1737, %v1983
    %v1985 = vlaneseq
    %v1986 = vshrl.u32 %v1985, 7
    %v1987 = vsub.s32 %v1839, %v1986
    %v1988 = vrot.slane %v1738, %v1987
    %v1989 = vsel %vm1844, %v1988, %v1984
    %v1990 = vlaneseq
    %v1991 = vshrl.u32 %v1990, 7
    %v1992 = vsub.s32 %v1834, %v1991
    %v1993 = vrot.slane %v1739, %v1992
    %v1994 = vlaneseq
    %v1995 = vshrl.u32 %v1994, 7
    %v1996 = vsub.s32 %v1839, %v1995
    %v1997 = vrot.slane %v1740, %v1996
    %v1998 = vsel %vm1844, %v1997, %v1993
    %v1999 = vlaneseq
    %v2000 = vshrl.u32 %v1999, 7
    %v2001 = vsub.s32 %v1834, %v2000
    %v2002 = vrot.slane %v1741, %v2001
    %v2003 = vlaneseq
    %v2004 = vshrl.u32 %v2003, 7
    %v2005 = vsub.s32 %v1839, %v2004
    %v2006 = vrot.slane %v1742, %v2005
    %v2007 = vsel %vm1844, %v2006, %v2002
    %v2008 = vlaneseq
    %v2009 = vshrl.u32 %v2008, 7
    %v2010 = vsub.s32 %v1834, %v2009
    %v2011 = vrot.slane %v1743, %v2010
    %v2012 = vlaneseq
    %v2013 = vshrl.u32 %v2012, 7
    %v2014 = vsub.s32 %v1839, %v2013
    %v2015 = vrot.slane %v1744, %v2014
    %v2016 = vsel %vm1844, %v2015, %v2011
    %v2017 = vlaneseq
    %v2018 = vshrl.u32 %v2017, 7
    %v2019 = vsub.s32 %v1834, %v2018
    %v2020 = vrot.slane %v1745, %v2019
    %v2021 = vlaneseq
    %v2022 = vshrl.u32 %v2021, 7
    %v2023 = vsub.s32 %v1839, %v2022
    %v2024 = vrot.slane %v1746, %v2023
    %v2025 = vsel %vm1844, %v2024, %v2020
    %v2026 = vlaneseq
    %v2027 = vshrl.u32 %v2026, 7
    %v2028 = vsub.s32 %v1834, %v2027
    %v2029 = vrot.slane %v1747, %v2028
    %v2030 = vlaneseq
    %v2031 = vshrl.u32 %v2030, 7
    %v2032 = vsub.s32 %v1839, %v2031
    %v2033 = vrot.slane %v1748, %v2032
    %v2034 = vsel %vm1844, %v2033, %v2029
    %v2035 = vlaneseq
    %v2036 = vshrl.u32 %v2035, 7
    %v2037 = vsub.s32 %v1834, %v2036
    %v2038 = vrot.slane %v1749, %v2037
    %v2039 = vlaneseq
    %v2040 = vshrl.u32 %v2039, 7
    %v2041 = vsub.s32 %v1839, %v2040
    %v2042 = vrot.slane %v1750, %v2041
    %v2043 = vsel %vm1844, %v2042, %v2038
    %v2044 = vlaneseq
    %v2045 = vshrl.u32 %v2044, 7
    %v2046 = vsub.s32 %v1834, %v2045
    %v2047 = vrot.slane %v1751, %v2046
    %v2048 = vlaneseq
    %v2049 = vshrl.u32 %v2048, 7
    %v2050 = vsub.s32 %v1839, %v2049
    %v2051 = vrot.slane %v1752, %v2050
    %v2052 = vsel %vm1844, %v2051, %v2047
    %v2053 = vlaneseq
    %v2054 = vshrl.u32 %v2053, 7
    %v2055 = vsub.s32 %v1834, %v2054
    %v2056 = vrot.slane %v1753, %v2055
    %v2057 = vlaneseq
    %v2058 = vshrl.u32 %v2057, 7
    %v2059 = vsub.s32 %v1839, %v2058
    %v2060 = vrot.slane %v1754, %v2059
    %v2061 = vsel %vm1844, %v2060, %v2056
    %v2062 = vlaneseq
    %v2063 = vshrl.u32 %v2062, 7
    %v2064 = vsub.s32 %v1834, %v2063
    %v2065 = vrot.slane %v1755, %v2064
    %v2066 = vlaneseq
    %v2067 = vshrl.u32 %v2066, 7
    %v2068 = vsub.s32 %v1839, %v2067
    %v2069 = vrot.slane %v1756, %v2068
    %v2070 = vsel %vm1844, %v2069, %v2065
    %v2071 = vlaneseq
    %v2072 = vshrl.u32 %v2071, 7
    %v2073 = vsub.s32 %v1834, %v2072
    %v2074 = vrot.slane %v1757, %v2073
    %v2075 = vlaneseq
    %v2076 = vshrl.u32 %v2075, 7
    %v2077 = vsub.s32 %v1839, %v2076
    %v2078 = vrot.slane %v1758, %v2077
    %v2079 = vsel %vm1844, %v2078, %v2074
    %v2080 = vlaneseq
    %v2081 = vshrl.u32 %v2080, 7
    %v2082 = vsub.s32 %v1834, %v2081
    %v2083 = vrot.slane %v1759, %v2082
    %v2084 = vlaneseq
    %v2085 = vshrl.u32 %v2084, 7
    %v2086 = vsub.s32 %v1839, %v2085
    %v2087 = vrot.slane %v1760, %v2086
    %v2088 = vsel %vm1844, %v2087, %v2083
    %v2089 = vlaneseq
    %v2090 = vshrl.u32 %v2089, 7
    %v2091 = vsub.s32 %v1834, %v2090
    %v2092 = vrot.slane %v1761, %v2091
    %v2093 = vlaneseq
    %v2094 = vshrl.u32 %v2093, 7
    %v2095 = vsub.s32 %v1839, %v2094
    %v2096 = vrot.slane %v1762, %v2095
    %v2097 = vsel %vm1844, %v2096, %v2092
    %v2098 = vlaneseq
    %v2099 = vshrl.u32 %v2098, 7
    %v2100 = vsub.s32 %v1834, %v2099
    %v2101 = vrot.slane %v1763, %v2100
    %v2102 = vlaneseq
    %v2103 = vshrl.u32 %v2102, 7
    %v2104 = vsub.s32 %v1839, %v2103
    %v2105 = vrot.slane %v1764, %v2104
    %v2106 = vsel %vm1844, %v2105, %v2101
    %v2107 = vlaneseq
    %v2108 = vshrl.u32 %v2107, 7
    %v2109 = vsub.s32 %v1834, %v2108
    %v2110 = vrot.slane %v1765, %v2109
    %v2111 = vlaneseq
    %v2112 = vshrl.u32 %v2111, 7
    %v2113 = vsub.s32 %v1839, %v2112
    %v2114 = vrot.slane %v1766, %v2113
    %v2115 = vsel %vm1844, %v2114, %v2110
    %v2116 = vlaneseq
    %v2117 = vshrl.u32 %v2116, 7
    %v2118 = vsub.s32 %v1834, %v2117
    %v2119 = vrot.slane %v1767, %v2118
    %v2120 = vlaneseq
    %v2121 = vshrl.u32 %v2120, 7
    %v2122 = vsub.s32 %v1839, %v2121
    %v2123 = vrot.slane %v1768, %v2122
    %v2124 = vsel %vm1844, %v2123, %v2119
    %vm2125 = vcmask 1041409
    %v2126 = vsel %vm2125, %v1854, %v1845
    %vm2127 = vcmask 1042434
    %v2128 = vsel %vm2127, %v1863, %v2126
    %vm2129 = vcmask 1043459
    %v2130 = vsel %vm2129, %v1872, %v2128
    %vm2131 = vcmask 1044484
    %v2132 = vsel %vm2131, %v1881, %v2130
    %vm2133 = vcmask 1045509
    %v2134 = vsel %vm2133, %v1890, %v2132
    %vm2135 = vcmask 1046534
    %v2136 = vsel %vm2135, %v1899, %v2134
    %vm2137 = vcmask 1047559
    %v2138 = vsel %vm2137, %v1908, %v2136
    %v2139 = vsel %vm2125, %v1926, %v1917
    %v2140 = vsel %vm2127, %v1935, %v2139
    %v2141 = vsel %vm2129, %v1944, %v2140
    %v2142 = vsel %vm2131, %v1953, %v2141
    %v2143 = vsel %vm2133, %v1962, %v2142
    %v2144 = vsel %vm2135, %v1971, %v2143
    %v2145 = vsel %vm2137, %v1980, %v2144
    %v2146 = vsel %vm2125, %v1998, %v1989
    %v2147 = vsel %vm2127, %v2007, %v2146
    %v2148 = vsel %vm2129, %v2016, %v2147
    %v2149 = vsel %vm2131, %v2025, %v2148
    %v2150 = vsel %vm2133, %v2034, %v2149
    %v2151 = vsel %vm2135, %v2043, %v2150
    %v2152 = vsel %vm2137, %v2052, %v2151
    %v2153 = vsel %vm2125, %v2070, %v2061
    %v2154 = vsel %vm2127, %v2079, %v2153
    %v2155 = vsel %vm2129, %v2088, %v2154
    %v2156 = vsel %vm2131, %v2097, %v2155
    %v2157 = vsel %vm2133, %v2106, %v2156
    %v2158 = vsel %vm2135, %v2115, %v2157
    %v2159 = vsel %vm2137, %v2124, %v2158
    %2164 = vxpose.xlu0.b32.start [1/16] %v2138, 128
    %2165 = vxpose.xlu0.b32.cont [2/16] %v2145, 128
    %2166 = vxpose.xlu0.b32.cont [3/16] 0.0, 128
    %2167 = vxpose.xlu0.b32.cont [4/16] 0.0, 128
    %2168 = vxpose.xlu0.b32.cont [5/16] 0.0, 128
    %2169 = vxpose.xlu0.b32.cont [6/16] 0.0, 128
    %2170 = vxpose.xlu0.b32.cont [7/16] 0.0, 128
    %2171 = vxpose.xlu0.b32.cont [8/16] 0.0, 128
    %2172 = vxpose.xlu0.b32.cont [9/16] 0.0, 128
    %2173 = vxpose.xlu0.b32.cont [10/16] 0.0, 128
    %2174 = vxpose.xlu0.b32.cont [11/16] 0.0, 128
    %2175 = vxpose.xlu0.b32.cont [12/16] 0.0, 128
    %2176 = vxpose.xlu0.b32.cont [13/16] 0.0, 128
    %2177 = vxpose.xlu0.b32.cont [14/16] 0.0, 128
    %2178 = vxpose.xlu0.b32.cont [15/16] 0.0, 128
    %2179 = vxpose.xlu0.b32.end [16/16] 0.0, 128
    %v2180 = vpop.trf.xlu0
    %v2181 = vpop.trf.xlu0
    %v2182 = vpop.trf.xlu0
    %v2183 = vpop.trf.xlu0
    %v2184 = vpop.trf.xlu0
    %v2185 = vpop.trf.xlu0
    %v2186 = vpop.trf.xlu0
    %v2187 = vpop.trf.xlu0
    %v2188 = vpop.trf.xlu0
    %v2189 = vpop.trf.xlu0
    %v2190 = vpop.trf.xlu0
    %v2191 = vpop.trf.xlu0
    %v2192 = vpop.trf.xlu0
    %v2193 = vpop.trf.xlu0
    %v2194 = vpop.trf.xlu0
    %v2195 = vpop.trf.xlu0
    %2196 = vxpose.xlu0.b32.start [1/16] %v2152, 128
    %2197 = vxpose.xlu0.b32.cont [2/16] %v2159, 128
    %2198 = vxpose.xlu0.b32.cont [3/16] 0.0, 128
    %2199 = vxpose.xlu0.b32.cont [4/16] 0.0, 128
    %2200 = vxpose.xlu0.b32.cont [5/16] 0.0, 128
    %2201 = vxpose.xlu0.b32.cont [6/16] 0.0, 128
    %2202 = vxpose.xlu0.b32.cont [7/16] 0.0, 128
    %2203 = vxpose.xlu0.b32.cont [8/16] 0.0, 128
    %2204 = vxpose.xlu0.b32.cont [9/16] 0.0, 128
    %2205 = vxpose.xlu0.b32.cont [10/16] 0.0, 128
    %2206 = vxpose.xlu0.b32.cont [11/16] 0.0, 128
    %2207 = vxpose.xlu0.b32.cont [12/16] 0.0, 128
    %2208 = vxpose.xlu0.b32.cont [13/16] 0.0, 128
    %2209 = vxpose.xlu0.b32.cont [14/16] 0.0, 128
    %2210 = vxpose.xlu0.b32.cont [15/16] 0.0, 128
    %2211 = vxpose.xlu0.b32.end [16/16] 0.0, 128
    %v2212 = vpop.trf.xlu0
    %v2213 = vpop.trf.xlu0
    %v2214 = vpop.trf.xlu0
    %v2215 = vpop.trf.xlu0
    %v2216 = vpop.trf.xlu0
    %v2217 = vpop.trf.xlu0
    %v2218 = vpop.trf.xlu0
    %v2219 = vpop.trf.xlu0
    %v2220 = vpop.trf.xlu0
    %v2221 = vpop.trf.xlu0
    %v2222 = vpop.trf.xlu0
    %v2223 = vpop.trf.xlu0
    %v2224 = vpop.trf.xlu0
    %v2225 = vpop.trf.xlu0
    %v2226 = vpop.trf.xlu0
    %v2227 = vpop.trf.xlu0
    %v2228 = vld [vmem:[%s7] sm:$0xff]
    %v2229 = vld [vmem:[%s7 + $0x8] sm:$0xff]
    %v2230 = vld [vmem:[%s8] sm:$0x1]
    %v2232 = vlaneseq
    %v2233 = vshrl.u32 %v2232, 7
    %v2234 = vsub.s32 0, %v2233
    %v2235 = vrot.slane %v2230, %v2234
    %vm2237 = vcmask 130048
    %v2238 = vsel %vm2237, %v2138, 0
    %v2240 = vsel %vm2237, %v2145, 0
    %v2242 = vsel %vm2237, %v2152, 0
    %v2244 = vsel %vm2237, %v2159, 0
    %2246 = vmatprep.subr.mxu0 0.0
    %2247 = vmatpush1.msra.mxu0 %v2228
    %2248 = vmatprep.subr.mxu0 0.0
    %2249 = vmatpush1.msra.mxu0 %v2229
    %2250 = vmatprep.subr.mxu0 0.0
    %2251 = vmatpush1.msra.mxu0 0.0
    %2252 = vmatprep.subr.mxu0 0.0
    %2253 = vmatpush1.msra.mxu0 0.0
    %2254 = vmatprep.subr.mxu0 0.0
    %2255 = vmatpush1.msra.mxu0 0.0
    %2256 = vmatprep.subr.mxu0 0.0
    %2257 = vmatpush1.msra.mxu0 0.0
    %2258 = vmatprep.subr.mxu0 0.0
    %2259 = vmatpush1.msra.mxu0 0.0
    %2260 = vmatprep.subr.mxu0 0.0
    %2261 = vmatpush1.msra.mxu0 0.0
    %2262 = vmatprep.subr.mxu0 0.0
    %2263 = vmatpush1.msra.mxu0 0.0
    %2264 = vmatprep.subr.mxu0 0.0
    %2265 = vmatpush1.msra.mxu0 0.0
    %2266 = vmatprep.subr.mxu0 0.0
    %2267 = vmatpush1.msra.mxu0 0.0
    %2268 = vmatprep.subr.mxu0 0.0
    %2269 = vmatpush1.msra.mxu0 0.0
    %2270 = vmatprep.subr.mxu0 0.0
    %2271 = vmatpush1.msra.mxu0 0.0
    %2272 = vmatprep.subr.mxu0 0.0
    %2273 = vmatpush1.msra.mxu0 0.0
    %2274 = vmatprep.subr.mxu0 0.0
    %2275 = vmatpush1.msra.mxu0 0.0
    %2276 = vmatprep.subr.mxu0 0.0
    %2277 = vmatpush1.msra.mxu0 0.0
    %2278 = vmatprep.subr.mxu0 0.0
    %2279 = vmatpush1.msra.mxu0 0.0
    %2280 = vmatprep.subr.mxu0 0.0
    %2281 = vmatpush1.msra.mxu0 0.0
    %2282 = vmatprep.subr.mxu0 0.0
    %2283 = vmatpush1.msra.mxu0 0.0
    %2284 = vmatprep.subr.mxu0 0.0
    %2285 = vmatpush1.msra.mxu0 0.0
    %2286 = vmatprep.subr.mxu0 0.0
    %2287 = vmatpush1.msra.mxu0 0.0
    %2288 = vmatprep.subr.mxu0 0.0
    %2289 = vmatpush1.msra.mxu0 0.0
    %2290 = vmatprep.subr.mxu0 0.0
    %2291 = vmatpush1.msra.mxu0 0.0
    %2292 = vmatprep.subr.mxu0 0.0
    %2293 = vmatpush1.msra.mxu0 0.0
    %2294 = vmatprep.subr.mxu0 0.0
    %2295 = vmatpush1.msra.mxu0 0.0
    %2296 = vmatprep.subr.mxu0 0.0
    %2297 = vmatpush1.msra.mxu0 0.0
    %2298 = vmatprep.subr.mxu0 0.0
    %2299 = vmatpush1.msra.mxu0 0.0
    %2300 = vmatprep.subr.mxu0 0.0
    %2301 = vmatpush1.msra.mxu0 0.0
    %2302 = vmatprep.subr.mxu0 0.0
    %2303 = vmatpush1.msra.mxu0 0.0
    %2304 = vmatprep.subr.mxu0 0.0
    %2305 = vmatpush1.msra.mxu0 0.0
    %2306 = vmatprep.subr.mxu0 0.0
    %2307 = vmatpush1.msra.mxu0 0.0
    %2308 = vmatprep.subr.mxu0 0.0
    %2309 = vmatpush1.msra.mxu0 0.0
    %2310 = vmatprep.mubr.f32.mxu0 0.0
    %2311 = vmatmul.mubr.f32.gmra.mrb[0].mxu0 %v2238
    %v2312 = vpop.f32.mrb[0].mxu0
    %v2313 = vadd.f32 %v2235, %v2312
    %v2314 = vpop.f32.mrb[0].mxu0
    %2315 = vmatprep.mubr.f32.mxu0 0.0
    %2316 = vmatmul.mubr.f32.gmra.mrb[0].mxu0 %v2240
    %v2317 = vpop.f32.mrb[0].mxu0
    %v2318 = vadd.f32 %v2235, %v2317
    %v2319 = vpop.f32.mrb[0].mxu0
    %2320 = vmatprep.mubr.f32.mxu0 0.0
    %2321 = vmatmul.mubr.f32.gmra.mrb[0].mxu0 %v2242
    %v2322 = vpop.f32.mrb[0].mxu0
    %v2323 = vadd.f32 %v2235, %v2322
    %v2324 = vpop.f32.mrb[0].mxu0
    %2325 = vmatprep.mubr.f32.mxu0 0.0
    %2326 = vmatmul.mubr.f32.gmra.mrb[0].mxu0 %v2244
    %v2327 = vpop.f32.mrb[0].mxu0
    %v2328 = vadd.f32 %v2235, %v2327
    %v2329 = vpop.f32.mrb[0].mxu0
    %2330 = vdwg.mxu0
    %v2331 = vmax.f32 %v2313, 0.0
    %v2332 = vmax.f32 %v2318, 0.0
    %v2333 = vmax.f32 %v2323, 0.0
    %v2334 = vmax.f32 %v2328, 0.0
    %v2335 = vld [vmem:[%s9] sm:$0xff]
    %v2336 = vld [vmem:[%s9 + $0x8] sm:$0xff]
    %v2337 = vld [vmem:[%s9 + $0x10] sm:$0xff]
    %v2338 = vld [vmem:[%s9 + $0x18] sm:$0xff]
    %v2339 = vld [vmem:[%s10] sm:$0x1]
    %v2341 = vlaneseq
    %v2342 = vshrl.u32 %v2341, 7
    %v2343 = vsub.s32 0, %v2342
    %v2344 = vrot.slane %v2339, %v2343
    %v2347 = vsel %vm1502, %v2331, 0
    %v2350 = vsel %vm1502, %v2332, 0
    %v2353 = vsel %vm1502, %v2333, 0
    %v2356 = vsel %vm1502, %v2334, 0
    %2358 = vmatprep.subr.mxu0 0.0
    %2359 = vmatpush1.msra.mxu0 %v2335
    %2360 = vmatprep.subr.mxu0 0.0
    %2361 = vmatpush1.msra.mxu0 %v2336
    %2362 = vmatprep.subr.mxu0 0.0
    %2363 = vmatpush1.msra.mxu0 %v2337
    %2364 = vmatprep.subr.mxu0 0.0
    %2365 = vmatpush1.msra.mxu0 %v2338
    %2366 = vmatprep.subr.mxu0 0.0
    %2367 = vmatpush1.msra.mxu0 0.0
    %2368 = vmatprep.subr.mxu0 0.0
    %2369 = vmatpush1.msra.mxu0 0.0
    %2370 = vmatprep.subr.mxu0 0.0
    %2371 = vmatpush1.msra.mxu0 0.0
    %2372 = vmatprep.subr.mxu0 0.0
    %2373 = vmatpush1.msra.mxu0 0.0
    %2374 = vmatprep.subr.mxu0 0.0
    %2375 = vmatpush1.msra.mxu0 0.0
    %2376 = vmatprep.subr.mxu0 0.0
    %2377 = vmatpush1.msra.mxu0 0.0
    %2378 = vmatprep.subr.mxu0 0.0
    %2379 = vmatpush1.msra.mxu0 0.0
    %2380 = vmatprep.subr.mxu0 0.0
    %2381 = vmatpush1.msra.mxu0 0.0
    %2382 = vmatprep.subr.mxu0 0.0
    %2383 = vmatpush1.msra.mxu0 0.0
    %2384 = vmatprep.subr.mxu0 0.0
    %2385 = vmatpush1.msra.mxu0 0.0
    %2386 = vmatprep.subr.mxu0 0.0
    %2387 = vmatpush1.msra.mxu0 0.0
    %2388 = vmatprep.subr.mxu0 0.0
    %2389 = vmatpush1.msra.mxu0 0.0
    %2390 = vmatprep.subr.mxu0 0.0
    %2391 = vmatpush1.msra.mxu0 0.0
    %2392 = vmatprep.subr.mxu0 0.0
    %2393 = vmatpush1.msra.mxu0 0.0
    %2394 = vmatprep.subr.mxu0 0.0
    %2395 = vmatpush1.msra.mxu0 0.0
    %2396 = vmatprep.subr.mxu0 0.0
    %2397 = vmatpush1.msra.mxu0 0.0
    %2398 = vmatprep.subr.mxu0 0.0
    %2399 = vmatpush1.msra.mxu0 0.0
    %2400 = vmatprep.subr.mxu0 0.0
    %2401 = vmatpush1.msra.mxu0 0.0
    %2402 = vmatprep.subr.mxu0 0.0
    %2403 = vmatpush1.msra.mxu0 0.0
    %2404 = vmatprep.subr.mxu0 0.0
    %2405 = vmatpush1.msra.mxu0 0.0
    %2406 = vmatprep.subr.mxu0 0.0
    %2407 = vmatpush1.msra.mxu0 0.0
    %2408 = vmatprep.subr.mxu0 0.0
    %2409 = vmatpush1.msra.mxu0 0.0
    %2410 = vmatprep.subr.mxu0 0.0
    %2411 = vmatpush1.msra.mxu0 0.0
    %2412 = vmatprep.subr.mxu0 0.0
    %2413 = vmatpush1.msra.mxu0 0.0
    %2414 = vmatprep.subr.mxu0 0.0
    %2415 = vmatpush1.msra.mxu0 0.0
    %2416 = vmatprep.subr.mxu0 0.0
    %2417 = vmatpush1.msra.mxu0 0.0
    %2418 = vmatprep.subr.mxu0 0.0
    %2419 = vmatpush1.msra.mxu0 0.0
    %2420 = vmatprep.subr.mxu0 0.0
    %2421 = vmatpush1.msra.mxu0 0.0
    %2422 = vmatprep.mubr.f32.mxu0 0.0
    %2423 = vmatmul.mubr.f32.gmra.mrb[0].mxu0 %v2347
    %v2424 = vpop.f32.mrb[0].mxu0
    %v2425 = vadd.f32 %v2344, %v2424
    %v2426 = vpop.f32.mrb[0].mxu0
    %2427 = vmatprep.mubr.f32.mxu0 0.0
    %2428 = vmatmul.mubr.f32.gmra.mrb[0].mxu0 %v2350
    %v2429 = vpop.f32.mrb[0].mxu0
    %v2430 = vadd.f32 %v2344, %v2429
    %v2431 = vpop.f32.mrb[0].mxu0
    %2432 = vmatprep.mubr.f32.mxu0 0.0
    %2433 = vmatmul.mubr.f32.gmra.mrb[0].mxu0 %v2353
    %v2434 = vpop.f32.mrb[0].mxu0
    %v2435 = vadd.f32 %v2344, %v2434
    %v2436 = vpop.f32.mrb[0].mxu0
    %2437 = vmatprep.mubr.f32.mxu0 0.0
    %2438 = vmatmul.mubr.f32.gmra.mrb[0].mxu0 %v2356
    %v2439 = vpop.f32.mrb[0].mxu0
    %v2440 = vadd.f32 %v2344, %v2439
    %v2441 = vpop.f32.mrb[0].mxu0
    %2442 = vdwg.mxu0
    %v2444 = vsel %vm2237, %v2180, 0
    %v2447 = vsel %vm2237, %v2181, 0
    %v2450 = vsel %vm2237, %v2212, 0
    %v2453 = vsel %vm2237, %v2213, 0
    %2455 = vmatprep.subr.mxu0 0.0
    %2456 = vmatpush1.msra.mxu0 %v2228
    %2457 = vmatprep.subr.mxu0 0.0
    %2458 = vmatpush1.msra.mxu0 %v2229
    %2459 = vmatprep.subr.mxu0 0.0
    %2460 = vmatpush1.msra.mxu0 0.0
    %2461 = vmatprep.subr.mxu0 0.0
    %2462 = vmatpush1.msra.mxu0 0.0
    %2463 = vmatprep.subr.mxu0 0.0
    %2464 = vmatpush1.msra.mxu0 0.0
    %2465 = vmatprep.subr.mxu0 0.0
    %2466 = vmatpush1.msra.mxu0 0.0
    %2467 = vmatprep.subr.mxu0 0.0
    %2468 = vmatpush1.msra.mxu0 0.0
    %2469 = vmatprep.subr.mxu0 0.0
    %2470 = vmatpush1.msra.mxu0 0.0
    %2471 = vmatprep.subr.mxu0 0.0
    %2472 = vmatpush1.msra.mxu0 0.0
    %2473 = vmatprep.subr.mxu0 0.0
    %2474 = vmatpush1.msra.mxu0 0.0
    %2475 = vmatprep.subr.mxu0 0.0
    %2476 = vmatpush1.msra.mxu0 0.0
    %2477 = vmatprep.subr.mxu0 0.0
    %2478 = vmatpush1.msra.mxu0 0.0
    %2479 = vmatprep.subr.mxu0 0.0
    %2480 = vmatpush1.msra.mxu0 0.0
    %2481 = vmatprep.subr.mxu0 0.0
    %2482 = vmatpush1.msra.mxu0 0.0
    %2483 = vmatprep.subr.mxu0 0.0
    %2484 = vmatpush1.msra.mxu0 0.0
    %2485 = vmatprep.subr.mxu0 0.0
    %2486 = vmatpush1.msra.mxu0 0.0
    %2487 = vmatprep.subr.mxu0 0.0
    %2488 = vmatpush1.msra.mxu0 0.0
    %2489 = vmatprep.subr.mxu0 0.0
    %2490 = vmatpush1.msra.mxu0 0.0
    %2491 = vmatprep.subr.mxu0 0.0
    %2492 = vmatpush1.msra.mxu0 0.0
    %2493 = vmatprep.subr.mxu0 0.0
    %2494 = vmatpush1.msra.mxu0 0.0
    %2495 = vmatprep.subr.mxu0 0.0
    %2496 = vmatpush1.msra.mxu0 0.0
    %2497 = vmatprep.subr.mxu0 0.0
    %2498 = vmatpush1.msra.mxu0 0.0
    %2499 = vmatprep.subr.mxu0 0.0
    %2500 = vmatpush1.msra.mxu0 0.0
    %2501 = vmatprep.subr.mxu0 0.0
    %2502 = vmatpush1.msra.mxu0 0.0
    %2503 = vmatprep.subr.mxu0 0.0
    %2504 = vmatpush1.msra.mxu0 0.0
    %2505 = vmatprep.subr.mxu0 0.0
    %2506 = vmatpush1.msra.mxu0 0.0
    %2507 = vmatprep.subr.mxu0 0.0
    %2508 = vmatpush1.msra.mxu0 0.0
    %2509 = vmatprep.subr.mxu0 0.0
    %2510 = vmatpush1.msra.mxu0 0.0
    %2511 = vmatprep.subr.mxu0 0.0
    %2512 = vmatpush1.msra.mxu0 0.0
    %2513 = vmatprep.subr.mxu0 0.0
    %2514 = vmatpush1.msra.mxu0 0.0
    %2515 = vmatprep.subr.mxu0 0.0
    %2516 = vmatpush1.msra.mxu0 0.0
    %2517 = vmatprep.subr.mxu0 0.0
    %2518 = vmatpush1.msra.mxu0 0.0
    %2519 = vmatprep.mubr.f32.mxu0 0.0
    %2520 = vmatmul.mubr.f32.gmra.mrb[0].mxu0 %v2444
    %v2521 = vpop.f32.mrb[0].mxu0
    %v2522 = vadd.f32 %v2235, %v2521
    %v2523 = vpop.f32.mrb[0].mxu0
    %2524 = vmatprep.mubr.f32.mxu0 0.0
    %2525 = vmatmul.mubr.f32.gmra.mrb[0].mxu0 %v2447
    %v2526 = vpop.f32.mrb[0].mxu0
    %v2527 = vadd.f32 %v2235, %v2526
    %v2528 = vpop.f32.mrb[0].mxu0
    %2529 = vmatprep.mubr.f32.mxu0 0.0
    %2530 = vmatmul.mubr.f32.gmra.mrb[0].mxu0 %v2450
    %v2531 = vpop.f32.mrb[0].mxu0
    %v2532 = vadd.f32 %v2235, %v2531
    %v2533 = vpop.f32.mrb[0].mxu0
    %2534 = vmatprep.mubr.f32.mxu0 0.0
    %2535 = vmatmul.mubr.f32.gmra.mrb[0].mxu0 %v2453
    %v2536 = vpop.f32.mrb[0].mxu0
    %v2537 = vadd.f32 %v2235, %v2536
    %v2538 = vpop.f32.mrb[0].mxu0
    %2539 = vdwg.mxu0
    %v2540 = vmax.f32 %v2522, 0.0
    %v2541 = vmax.f32 %v2527, 0.0
    %v2542 = vmax.f32 %v2532, 0.0
    %v2543 = vmax.f32 %v2537, 0.0
    %v2545 = vsel %vm1502, %v2540, 0
    %v2548 = vsel %vm1502, %v2541, 0
    %v2551 = vsel %vm1502, %v2542, 0
    %v2554 = vsel %vm1502, %v2543, 0
    %2556 = vmatprep.subr.mxu0 0.0
    %2557 = vmatpush1.msra.mxu0 %v2335
    %2558 = vmatprep.subr.mxu0 0.0
    %2559 = vmatpush1.msra.mxu0 %v2336
    %2560 = vmatprep.subr.mxu0 0.0
    %2561 = vmatpush1.msra.mxu0 %v2337
    %2562 = vmatprep.subr.mxu0 0.0
    %2563 = vmatpush1.msra.mxu0 %v2338
    %2564 = vmatprep.subr.mxu0 0.0
    %2565 = vmatpush1.msra.mxu0 0.0
    %2566 = vmatprep.subr.mxu0 0.0
    %2567 = vmatpush1.msra.mxu0 0.0
    %2568 = vmatprep.subr.mxu0 0.0
    %2569 = vmatpush1.msra.mxu0 0.0
    %2570 = vmatprep.subr.mxu0 0.0
    %2571 = vmatpush1.msra.mxu0 0.0
    %2572 = vmatprep.subr.mxu0 0.0
    %2573 = vmatpush1.msra.mxu0 0.0
    %2574 = vmatprep.subr.mxu0 0.0
    %2575 = vmatpush1.msra.mxu0 0.0
    %2576 = vmatprep.subr.mxu0 0.0
    %2577 = vmatpush1.msra.mxu0 0.0
    %2578 = vmatprep.subr.mxu0 0.0
    %2579 = vmatpush1.msra.mxu0 0.0
    %2580 = vmatprep.subr.mxu0 0.0
    %2581 = vmatpush1.msra.mxu0 0.0
    %2582 = vmatprep.subr.mxu0 0.0
    %2583 = vmatpush1.msra.mxu0 0.0
    %2584 = vmatprep.subr.mxu0 0.0
    %2585 = vmatpush1.msra.mxu0 0.0
    %2586 = vmatprep.subr.mxu0 0.0
    %2587 = vmatpush1.msra.mxu0 0.0
    %2588 = vmatprep.subr.mxu0 0.0
    %2589 = vmatpush1.msra.mxu0 0.0
    %2590 = vmatprep.subr.mxu0 0.0
    %2591 = vmatpush1.msra.mxu0 0.0
    %2592 = vmatprep.subr.mxu0 0.0
    %2593 = vmatpush1.msra.mxu0 0.0
    %2594 = vmatprep.subr.mxu0 0.0
    %2595 = vmatpush1.msra.mxu0 0.0
    %2596 = vmatprep.subr.mxu0 0.0
    %2597 = vmatpush1.msra.mxu0 0.0
    %2598 = vmatprep.subr.mxu0 0.0
    %2599 = vmatpush1.msra.mxu0 0.0
    %2600 = vmatprep.subr.mxu0 0.0
    %2601 = vmatpush1.msra.mxu0 0.0
    %2602 = vmatprep.subr.mxu0 0.0
    %2603 = vmatpush1.msra.mxu0 0.0
    %2604 = vmatprep.subr.mxu0 0.0
    %2605 = vmatpush1.msra.mxu0 0.0
    %2606 = vmatprep.subr.mxu0 0.0
    %2607 = vmatpush1.msra.mxu0 0.0
    %2608 = vmatprep.subr.mxu0 0.0
    %2609 = vmatpush1.msra.mxu0 0.0
    %2610 = vmatprep.subr.mxu0 0.0
    %2611 = vmatpush1.msra.mxu0 0.0
    %2612 = vmatprep.subr.mxu0 0.0
    %2613 = vmatpush1.msra.mxu0 0.0
    %2614 = vmatprep.subr.mxu0 0.0
    %2615 = vmatpush1.msra.mxu0 0.0
    %2616 = vmatprep.subr.mxu0 0.0
    %2617 = vmatpush1.msra.mxu0 0.0
    %2618 = vmatprep.subr.mxu0 0.0
    %2619 = vmatpush1.msra.mxu0 0.0
    %2620 = vmatprep.mubr.f32.mxu0 0.0
    %2621 = vmatmul.mubr.f32.gmra.mrb[0].mxu0 %v2545
    %v2622 = vpop.f32.mrb[0].mxu0
    %v2623 = vadd.f32 %v2344, %v2622
    %v2624 = vpop.f32.mrb[0].mxu0
    %2625 = vmatprep.mubr.f32.mxu0 0.0
    %2626 = vmatmul.mubr.f32.gmra.mrb[0].mxu0 %v2548
    %v2627 = vpop.f32.mrb[0].mxu0
    %v2628 = vadd.f32 %v2344, %v2627
    %v2629 = vpop.f32.mrb[0].mxu0
    %2630 = vmatprep.mubr.f32.mxu0 0.0
    %2631 = vmatmul.mubr.f32.gmra.mrb[0].mxu0 %v2551
    %v2632 = vpop.f32.mrb[0].mxu0
    %v2633 = vadd.f32 %v2344, %v2632
    %v2634 = vpop.f32.mrb[0].mxu0
    %2635 = vmatprep.mubr.f32.mxu0 0.0
    %2636 = vmatmul.mubr.f32.gmra.mrb[0].mxu0 %v2554
    %v2637 = vpop.f32.mrb[0].mxu0
    %v2638 = vadd.f32 %v2344, %v2637
    %v2639 = vpop.f32.mrb[0].mxu0
    %2640 = vdwg.mxu0
    %v2641 = vld [vmem:[%s11] sm:$0xff]
    %v2642 = vld [vmem:[%s11 + $0x8] sm:$0xff]
    %v2643 = vld [vmem:[%s11 + $0x10] sm:$0xff]
    %v2644 = vld [vmem:[%s11 + $0x18] sm:$0xff]
    %v2645 = vld [vmem:[%s12] sm:$0xff]
    %v2646 = vld [vmem:[%s12 + $0x8] sm:$0xff]
    %v2647 = vld [vmem:[%s12 + $0x10] sm:$0xff]
    %v2648 = vld [vmem:[%s12 + $0x18] sm:$0xff]
    %v2650 = vsel %vm1502, %v2623, 0
    %v2653 = vsel %vm1502, %v2628, 0
    %v2656 = vsel %vm1502, %v2633, 0
    %v2659 = vsel %vm1502, %v2638, 0
    %2661 = vmatprep.subr.mxu0 0.0
    %2662 = vmatpush1.msra.mxu0 %v2645
    %2663 = vmatprep.subr.mxu0 0.0
    %2664 = vmatpush1.msra.mxu0 %v2646
    %2665 = vmatprep.subr.mxu0 0.0
    %2666 = vmatpush1.msra.mxu0 %v2647
    %2667 = vmatprep.subr.mxu0 0.0
    %2668 = vmatpush1.msra.mxu0 %v2648
    %2669 = vmatprep.subr.mxu0 0.0
    %2670 = vmatpush1.msra.mxu0 0.0
    %2671 = vmatprep.subr.mxu0 0.0
    %2672 = vmatpush1.msra.mxu0 0.0
    %2673 = vmatprep.subr.mxu0 0.0
    %2674 = vmatpush1.msra.mxu0 0.0
    %2675 = vmatprep.subr.mxu0 0.0
    %2676 = vmatpush1.msra.mxu0 0.0
    %2677 = vmatprep.subr.mxu0 0.0
    %2678 = vmatpush1.msra.mxu0 0.0
    %2679 = vmatprep.subr.mxu0 0.0
    %2680 = vmatpush1.msra.mxu0 0.0
    %2681 = vmatprep.subr.mxu0 0.0
    %2682 = vmatpush1.msra.mxu0 0.0
    %2683 = vmatprep.subr.mxu0 0.0
    %2684 = vmatpush1.msra.mxu0 0.0
    %2685 = vmatprep.subr.mxu0 0.0
    %2686 = vmatpush1.msra.mxu0 0.0
    %2687 = vmatprep.subr.mxu0 0.0
    %2688 = vmatpush1.msra.mxu0 0.0
    %2689 = vmatprep.subr.mxu0 0.0
    %2690 = vmatpush1.msra.mxu0 0.0
    %2691 = vmatprep.subr.mxu0 0.0
    %2692 = vmatpush1.msra.mxu0 0.0
    %2693 = vmatprep.subr.mxu0 0.0
    %2694 = vmatpush1.msra.mxu0 0.0
    %2695 = vmatprep.subr.mxu0 0.0
    %2696 = vmatpush1.msra.mxu0 0.0
    %2697 = vmatprep.subr.mxu0 0.0
    %2698 = vmatpush1.msra.mxu0 0.0
    %2699 = vmatprep.subr.mxu0 0.0
    %2700 = vmatpush1.msra.mxu0 0.0
    %2701 = vmatprep.subr.mxu0 0.0
    %2702 = vmatpush1.msra.mxu0 0.0
    %2703 = vmatprep.subr.mxu0 0.0
    %2704 = vmatpush1.msra.mxu0 0.0
    %2705 = vmatprep.subr.mxu0 0.0
    %2706 = vmatpush1.msra.mxu0 0.0
    %2707 = vmatprep.subr.mxu0 0.0
    %2708 = vmatpush1.msra.mxu0 0.0
    %2709 = vmatprep.subr.mxu0 0.0
    %2710 = vmatpush1.msra.mxu0 0.0
    %2711 = vmatprep.subr.mxu0 0.0
    %2712 = vmatpush1.msra.mxu0 0.0
    %2713 = vmatprep.subr.mxu0 0.0
    %2714 = vmatpush1.msra.mxu0 0.0
    %2715 = vmatprep.subr.mxu0 0.0
    %2716 = vmatpush1.msra.mxu0 0.0
    %2717 = vmatprep.subr.mxu0 0.0
    %2718 = vmatpush1.msra.mxu0 0.0
    %2719 = vmatprep.subr.mxu0 0.0
    %2720 = vmatpush1.msra.mxu0 0.0
    %2721 = vmatprep.subr.mxu0 0.0
    %2722 = vmatpush1.msra.mxu0 0.0
    %2723 = vmatprep.subr.mxu0 0.0
    %2724 = vmatpush1.msra.mxu0 0.0
    %2725 = vmatprep.mubr.f32.mxu0 0.0
    %2726 = vmatmul.mubr.f32.gmra.mrb[0].mxu0 %v2650
    %v2727 = vpop.f32.mrb[0].mxu0
    %v2728 = vadd.f32 0.0, %v2727
    %v2729 = vpop.f32.mrb[0].mxu0
    %2730 = vmatprep.mubr.f32.mxu0 0.0
    %2731 = vmatmul.mubr.f32.gmra.mrb[0].mxu0 %v2653
    %v2732 = vpop.f32.mrb[0].mxu0
    %v2733 = vadd.f32 0.0, %v2732
    %v2734 = vpop.f32.mrb[0].mxu0
    %2735 = vmatprep.mubr.f32.mxu0 0.0
    %2736 = vmatmul.mubr.f32.gmra.mrb[0].mxu0 %v2656
    %v2737 = vpop.f32.mrb[0].mxu0
    %v2738 = vadd.f32 0.0, %v2737
    %v2739 = vpop.f32.mrb[0].mxu0
    %2740 = vmatprep.mubr.f32.mxu0 0.0
    %2741 = vmatmul.mubr.f32.gmra.mrb[0].mxu0 %v2659
    %v2742 = vpop.f32.mrb[0].mxu0
    %v2743 = vadd.f32 0.0, %v2742
    %v2744 = vpop.f32.mrb[0].mxu0
    %2745 = vdwg.mxu0
    %v2747 = vsel %vm1502, %v2425, 0
    %v2750 = vsel %vm1502, %v2430, 0
    %v2753 = vsel %vm1502, %v2435, 0
    %v2756 = vsel %vm1502, %v2440, 0
    %2758 = vmatprep.subr.mxu0 0.0
    %2759 = vmatpush1.msra.mxu0 %v2641
    %2760 = vmatprep.subr.mxu0 0.0
    %2761 = vmatpush1.msra.mxu0 %v2642
    %2762 = vmatprep.subr.mxu0 0.0
    %2763 = vmatpush1.msra.mxu0 %v2643
    %2764 = vmatprep.subr.mxu0 0.0
    %2765 = vmatpush1.msra.mxu0 %v2644
    %2766 = vmatprep.subr.mxu0 0.0
    %2767 = vmatpush1.msra.mxu0 0.0
    %2768 = vmatprep.subr.mxu0 0.0
    %2769 = vmatpush1.msra.mxu0 0.0
    %2770 = vmatprep.subr.mxu0 0.0
    %2771 = vmatpush1.msra.mxu0 0.0
    %2772 = vmatprep.subr.mxu0 0.0
    %2773 = vmatpush1.msra.mxu0 0.0
    %2774 = vmatprep.subr.mxu0 0.0
    %2775 = vmatpush1.msra.mxu0 0.0
    %2776 = vmatprep.subr.mxu0 0.0
    %2777 = vmatpush1.msra.mxu0 0.0
    %2778 = vmatprep.subr.mxu0 0.0
    %2779 = vmatpush1.msra.mxu0 0.0
    %2780 = vmatprep.subr.mxu0 0.0
    %2781 = vmatpush1.msra.mxu0 0.0
    %2782 = vmatprep.subr.mxu0 0.0
    %2783 = vmatpush1.msra.mxu0 0.0
    %2784 = vmatprep.subr.mxu0 0.0
    %2785 = vmatpush1.msra.mxu0 0.0
    %2786 = vmatprep.subr.mxu0 0.0
    %2787 = vmatpush1.msra.mxu0 0.0
    %2788 = vmatprep.subr.mxu0 0.0
    %2789 = vmatpush1.msra.mxu0 0.0
    %2790 = vmatprep.subr.mxu0 0.0
    %2791 = vmatpush1.msra.mxu0 0.0
    %2792 = vmatprep.subr.mxu0 0.0
    %2793 = vmatpush1.msra.mxu0 0.0
    %2794 = vmatprep.subr.mxu0 0.0
    %2795 = vmatpush1.msra.mxu0 0.0
    %2796 = vmatprep.subr.mxu0 0.0
    %2797 = vmatpush1.msra.mxu0 0.0
    %2798 = vmatprep.subr.mxu0 0.0
    %2799 = vmatpush1.msra.mxu0 0.0
    %2800 = vmatprep.subr.mxu0 0.0
    %2801 = vmatpush1.msra.mxu0 0.0
    %2802 = vmatprep.subr.mxu0 0.0
    %2803 = vmatpush1.msra.mxu0 0.0
    %2804 = vmatprep.subr.mxu0 0.0
    %2805 = vmatpush1.msra.mxu0 0.0
    %2806 = vmatprep.subr.mxu0 0.0
    %2807 = vmatpush1.msra.mxu0 0.0
    %2808 = vmatprep.subr.mxu0 0.0
    %2809 = vmatpush1.msra.mxu0 0.0
    %2810 = vmatprep.subr.mxu0 0.0
    %2811 = vmatpush1.msra.mxu0 0.0
    %2812 = vmatprep.subr.mxu0 0.0
    %2813 = vmatpush1.msra.mxu0 0.0
    %2814 = vmatprep.subr.mxu0 0.0
    %2815 = vmatpush1.msra.mxu0 0.0
    %2816 = vmatprep.subr.mxu0 0.0
    %2817 = vmatpush1.msra.mxu0 0.0
    %2818 = vmatprep.subr.mxu0 0.0
    %2819 = vmatpush1.msra.mxu0 0.0
    %2820 = vmatprep.subr.mxu0 0.0
    %2821 = vmatpush1.msra.mxu0 0.0
    %2822 = vmatprep.mubr.f32.mxu0 0.0
    %2823 = vmatmul.mubr.f32.gmra.mrb[0].mxu0 %v2747
    %v2824 = vpop.f32.mrb[0].mxu0
    %v2825 = vadd.f32 %v2728, %v2824
    %v2826 = vpop.f32.mrb[0].mxu0
    %2827 = vmatprep.mubr.f32.mxu0 0.0
    %2828 = vmatmul.mubr.f32.gmra.mrb[0].mxu0 %v2750
    %v2829 = vpop.f32.mrb[0].mxu0
    %v2830 = vadd.f32 %v2733, %v2829
    %v2831 = vpop.f32.mrb[0].mxu0
    %2832 = vmatprep.mubr.f32.mxu0 0.0
    %2833 = vmatmul.mubr.f32.gmra.mrb[0].mxu0 %v2753
    %v2834 = vpop.f32.mrb[0].mxu0
    %v2835 = vadd.f32 %v2738, %v2834
    %v2836 = vpop.f32.mrb[0].mxu0
    %2837 = vmatprep.mubr.f32.mxu0 0.0
    %2838 = vmatmul.mubr.f32.gmra.mrb[0].mxu0 %v2756
    %v2839 = vpop.f32.mrb[0].mxu0
    %v2840 = vadd.f32 %v2743, %v2839
    %v2841 = vpop.f32.mrb[0].mxu0
    %2842 = vdwg.mxu0
    %v2843 = vld [vmem:[%s13] sm:$0x1]
    %v2845 = vlaneseq
    %v2846 = vshrl.u32 %v2845, 7
    %v2847 = vsub.s32 0, %v2846
    %v2848 = vrot.slane %v2843, %v2847
    %v2850 = vadd.f32 %v2825, %v2848
    %v2851 = vadd.f32 %v2830, %v2848
    %v2852 = vadd.f32 %v2835, %v2848
    %v2853 = vadd.f32 %v2840, %v2848
    %v2854 = vmax.f32 %v2850, 0.0
    %v2855 = vmax.f32 %v2851, 0.0
    %v2856 = vmax.f32 %v2852, 0.0
    %v2857 = vmax.f32 %v2853, 0.0
    %v2858 = vld [vmem:[%s14] sm:$0xff]
    %v2859 = vld [vmem:[%s14 + $0x8] sm:$0xff]
    %v2860 = vld [vmem:[%s14 + $0x10] sm:$0xff]
    %v2861 = vld [vmem:[%s14 + $0x18] sm:$0xff]
    %v2862 = vld [vmem:[%s15] sm:$0x1]
    %v2864 = vlaneseq
    %v2865 = vshrl.u32 %v2864, 7
    %v2866 = vsub.s32 0, %v2865
    %v2867 = vrot.slane %v2862, %v2866
    %v2870 = vsel %vm1502, %v2854, 0
    %v2873 = vsel %vm1502, %v2855, 0
    %v2876 = vsel %vm1502, %v2856, 0
    %v2879 = vsel %vm1502, %v2857, 0
    %2881 = vmatprep.subr.mxu0 0.0
    %2882 = vmatpush1.msra.mxu0 %v2858
    %2883 = vmatprep.subr.mxu0 0.0
    %2884 = vmatpush1.msra.mxu0 %v2859
    %2885 = vmatprep.subr.mxu0 0.0
    %2886 = vmatpush1.msra.mxu0 %v2860
    %2887 = vmatprep.subr.mxu0 0.0
    %2888 = vmatpush1.msra.mxu0 %v2861
    %2889 = vmatprep.subr.mxu0 0.0
    %2890 = vmatpush1.msra.mxu0 0.0
    %2891 = vmatprep.subr.mxu0 0.0
    %2892 = vmatpush1.msra.mxu0 0.0
    %2893 = vmatprep.subr.mxu0 0.0
    %2894 = vmatpush1.msra.mxu0 0.0
    %2895 = vmatprep.subr.mxu0 0.0
    %2896 = vmatpush1.msra.mxu0 0.0
    %2897 = vmatprep.subr.mxu0 0.0
    %2898 = vmatpush1.msra.mxu0 0.0
    %2899 = vmatprep.subr.mxu0 0.0
    %2900 = vmatpush1.msra.mxu0 0.0
    %2901 = vmatprep.subr.mxu0 0.0
    %2902 = vmatpush1.msra.mxu0 0.0
    %2903 = vmatprep.subr.mxu0 0.0
    %2904 = vmatpush1.msra.mxu0 0.0
    %2905 = vmatprep.subr.mxu0 0.0
    %2906 = vmatpush1.msra.mxu0 0.0
    %2907 = vmatprep.subr.mxu0 0.0
    %2908 = vmatpush1.msra.mxu0 0.0
    %2909 = vmatprep.subr.mxu0 0.0
    %2910 = vmatpush1.msra.mxu0 0.0
    %2911 = vmatprep.subr.mxu0 0.0
    %2912 = vmatpush1.msra.mxu0 0.0
    %2913 = vmatprep.subr.mxu0 0.0
    %2914 = vmatpush1.msra.mxu0 0.0
    %2915 = vmatprep.subr.mxu0 0.0
    %2916 = vmatpush1.msra.mxu0 0.0
    %2917 = vmatprep.subr.mxu0 0.0
    %2918 = vmatpush1.msra.mxu0 0.0
    %2919 = vmatprep.subr.mxu0 0.0
    %2920 = vmatpush1.msra.mxu0 0.0
    %2921 = vmatprep.subr.mxu0 0.0
    %2922 = vmatpush1.msra.mxu0 0.0
    %2923 = vmatprep.subr.mxu0 0.0
    %2924 = vmatpush1.msra.mxu0 0.0
    %2925 = vmatprep.subr.mxu0 0.0
    %2926 = vmatpush1.msra.mxu0 0.0
    %2927 = vmatprep.subr.mxu0 0.0
    %2928 = vmatpush1.msra.mxu0 0.0
    %2929 = vmatprep.subr.mxu0 0.0
    %2930 = vmatpush1.msra.mxu0 0.0
    %2931 = vmatprep.subr.mxu0 0.0
    %2932 = vmatpush1.msra.mxu0 0.0
    %2933 = vmatprep.subr.mxu0 0.0
    %2934 = vmatpush1.msra.mxu0 0.0
    %2935 = vmatprep.subr.mxu0 0.0
    %2936 = vmatpush1.msra.mxu0 0.0
    %2937 = vmatprep.subr.mxu0 0.0
    %2938 = vmatpush1.msra.mxu0 0.0
    %2939 = vmatprep.subr.mxu0 0.0
    %2940 = vmatpush1.msra.mxu0 0.0
    %2941 = vmatprep.subr.mxu0 0.0
    %2942 = vmatpush1.msra.mxu0 0.0
    %2943 = vmatprep.subr.mxu0 0.0
    %2944 = vmatpush1.msra.mxu0 0.0
    %2945 = vmatprep.mubr.f32.mxu0 0.0
    %2946 = vmatmul.mubr.f32.gmra.mrb[0].mxu0 %v2870
    %v2947 = vpop.f32.mrb[0].mxu0
    %v2948 = vadd.f32 %v2867, %v2947
    %v2949 = vpop.f32.mrb[0].mxu0
    %2950 = vmatprep.mubr.f32.mxu0 0.0
    %2951 = vmatmul.mubr.f32.gmra.mrb[0].mxu0 %v2873
    %v2952 = vpop.f32.mrb[0].mxu0
    %v2953 = vadd.f32 %v2867, %v2952
    %v2954 = vpop.f32.mrb[0].mxu0
    %2955 = vmatprep.mubr.f32.mxu0 0.0
    %2956 = vmatmul.mubr.f32.gmra.mrb[0].mxu0 %v2876
    %v2957 = vpop.f32.mrb[0].mxu0
    %v2958 = vadd.f32 %v2867, %v2957
    %v2959 = vpop.f32.mrb[0].mxu0
    %2960 = vmatprep.mubr.f32.mxu0 0.0
    %2961 = vmatmul.mubr.f32.gmra.mrb[0].mxu0 %v2879
    %v2962 = vpop.f32.mrb[0].mxu0
    %v2963 = vadd.f32 %v2867, %v2962
    %v2964 = vpop.f32.mrb[0].mxu0
    %2965 = vdwg.mxu0
    %2966 = vst.msk [vmem:[#allocation3] sm:$0xff] %vm1502, %v2948
    %2967 = vst.msk [vmem:[#allocation3 + $0x8] sm:$0xff] %vm1502, %v2953
    %2968 = vst.msk [vmem:[#allocation3 + $0x10] sm:$0xff] %vm1502, %v2958
    %2969 = vst.msk [vmem:[#allocation3 + $0x18] sm:$0xff] %vm1502, %v2963
    // Predicated region
    $region66: #{tpu_custom_call.1} parent=1 // pred_check
      _
    $region67: #{tpu_custom_call.1} parent=1 // pred_check_branch
      %2971 = sbr.rel (0) target = $region69
    $region68: #{tpu_custom_call.1} parent=1 // pred_region
      %s2973 = ssub.s32 512, 512
      %2974 = vsyncadd [#allocation4], %s2973
      %s2975 = sshll.u32 [#allocation3], 4
      %s2976 = int_to_ptr.vmem [resolvable:$true] %s2975
      %2981 = dma.vmem_to_hbm [thread:$0]  %s2976, 512, %s16, [#allocation4], 128, 128, 8
    $region69: #{tpu_custom_call.1} parent=1 // pred_fallthru
      _
    // Predicated region
    $region70: #{tpu_custom_call.1} parent=1 // pred_check
      _
    $region71: #{tpu_custom_call.1} parent=1 // pred_check_branch
      %2983 = sbr.rel (0) target = $region73
    $region72: #{tpu_custom_call.1} parent=1 // pred_region
      %2984 = dma.done [#allocation4], 512
    $region73: #{tpu_custom_call.1} parent=1 // pred_fallthru
      _
    %2985 = vsyncpa [#allocation4], 1

</llo_original>
